<compile_context>
chip_gen: v6e
topology: v6e:2x2x1
jax: 0.10.0
libtpu: 0.0.40
codegen_flags: <defaults>
</compile_context>

<pallas_src>
import functools

import jax
import jax.numpy as jnp
from jax.experimental import pallas as pl
from jax.experimental.pallas import tpu as pltpu


def _round_up(x, m):
    return (x + m - 1) // m * m


def _choose_tile(dim):
    """Pick tile in {128,256,512}: minimise grid steps, then padded size."""
    best = None
    for t in (128, 256, 512):
        p = _round_up(dim, t)
        key = (p // t, p)
        if best is None or key < best[0]:
            best = (key, t, p)
    return best[1], best[2]


# ---------------------------------------------------------------------------
# Pallas kernels
# ---------------------------------------------------------------------------
def _matmul_bn_act_kernel(*refs, relu, has_residual):
    if has_residual:
        x_ref, w_ref, s_ref, b_ref, r_ref, o_ref, acc_ref = refs
    else:
        x_ref, w_ref, s_ref, b_ref, o_ref, acc_ref = refs
        r_ref = None

    @pl.when(pl.program_id(2) == 0)
    def _init():
        acc_ref[...] = jnp.zeros_like(acc_ref)

    acc_ref[...] += jnp.dot(x_ref[...], w_ref[...],
                            preferred_element_type=jnp.float32)

    @pl.when(pl.program_id(2) == pl.num_programs(2) - 1)
    def _finalize():
        y = acc_ref[...] * s_ref[...] + b_ref[...]
        if has_residual:
            y = y + r_ref[...].astype(jnp.float32)
        if relu:
            y = jnp.maximum(y, 0.0)
        o_ref[...] = y.astype(o_ref.dtype)


@functools.partial(jax.jit, static_argnames=("relu", "out_dtype"))
def matmul_bn_act(x, w, scale, bias, residual=None, *, relu,
                  out_dtype=jnp.bfloat16):
    """out = act((x @ w) * scale + bias [+ residual]); scale/bias broadcast over rows.

    x/w (and optional residual) are cast to bf16 (native MXU); the accumulator
    and BN epilogue stay in f32; output dtype is `out_dtype` (bf16 between layers).
    """
    M, K = x.shape
    _, N = w.shape

    # Adaptive tiling: never pad small M up to 128 (layer3/4 have M=8..32).
    if M < 128:
        TM = _round_up(M, 8)
        Mp = TM
    else:
        TM, Mp = _choose_tile(M)
    TK, Kp = _choose_tile(K)
    TN, Np = _choose_tile(N)

    xp = jnp.pad(x.astype(jnp.bfloat16), ((0, Mp - M), (0, Kp - K)))
    wp = jnp.pad(w.astype(jnp.bfloat16), ((0, Kp - K), (0, Np - N)))
    sp = jnp.pad(scale.astype(jnp.float32), ((0, Np - N),)).reshape(1, Np)
    bp = jnp.pad(bias.astype(jnp.float32), ((0, Np - N),)).reshape(1, Np)

    has_residual = residual is not None
    in_specs = [
        pl.BlockSpec((TM, TK), lambda i, j, k: (i, k)),
        pl.BlockSpec((TK, TN), lambda i, j, k: (k, j)),
        pl.BlockSpec((1, TN), lambda i, j, k: (0, j)),
        pl.BlockSpec((1, TN), lambda i, j, k: (0, j)),
    ]
    args = [xp, wp, sp, bp]
    if has_residual:
        rp = jnp.pad(residual.astype(jnp.bfloat16),
                     ((0, Mp - M), (0, Np - N)))
        in_specs.append(pl.BlockSpec((TM, TN), lambda i, j, k: (i, j)))
        args.append(rp)

    out = pl.pallas_call(
        functools.partial(_matmul_bn_act_kernel, relu=relu,
                          has_residual=has_residual),
        out_shape=jax.ShapeDtypeStruct((Mp, Np), out_dtype),
        grid_spec=pltpu.PrefetchScalarGridSpec(
            num_scalar_prefetch=0,
            grid=(Mp // TM, Np // TN, Kp // TK),
            in_specs=in_specs,
            out_specs=pl.BlockSpec((TM, TN), lambda i, j, k: (i, j)),
            scratch_shapes=[pltpu.VMEM((TM, TN), jnp.float32)],
        ),
        compiler_params=pltpu.CompilerParams(
            dimension_semantics=("parallel", "parallel", "arbitrary")),
    )(*args)
    return out[:M, :N]


def _max9_kernel(x_ref, o_ref):
    r = x_ref[0].astype(jnp.float32)
    for t in range(1, 9):
        r = jnp.maximum(r, x_ref[t].astype(jnp.float32))
    o_ref[...] = r.astype(o_ref.dtype)


@jax.jit
def maxpool9(stacked):
    """stacked: (9, M, C) shifted views -> elementwise max over axis 0."""
    _, M, C = stacked.shape
    TM = 256 if M >= 256 else _round_up(M, 8)
    Mp, Cp = _round_up(M, TM), _round_up(C, 128)
    xp = jnp.pad(stacked.astype(jnp.bfloat16),
                 ((0, 0), (0, Mp - M), (0, Cp - C)))
    out = pl.pallas_call(
        _max9_kernel,
        out_shape=jax.ShapeDtypeStruct((Mp, Cp), jnp.bfloat16),
        grid=(Mp // TM,),
        in_specs=[pl.BlockSpec((9, TM, Cp), lambda i: (0, i, 0))],
        out_specs=pl.BlockSpec((TM, Cp), lambda i: (i, 0)),
        compiler_params=pltpu.CompilerParams(
            dimension_semantics=("parallel",)),
    )(xp)
    return out[:M, :C]


def _avgpool_kernel(x_ref, o_ref):
    o_ref[...] = jnp.mean(x_ref[...].astype(jnp.float32),
                          axis=1).astype(o_ref.dtype)


@jax.jit
def avgpool_spatial(x):
    """x: (N, S, C) -> (N, C) mean over spatial axis S (AdaptiveAvgPool2d(1))."""
    N, S, C = x.shape
    Np, Cp = _round_up(N, 8), _round_up(C, 128)
    xp = jnp.pad(x.astype(jnp.bfloat16), ((0, Np - N), (0, 0), (0, Cp - C)))
    out = pl.pallas_call(
        _avgpool_kernel,
        out_shape=jax.ShapeDtypeStruct((Np, Cp), jnp.bfloat16),
        grid=(1,),
        in_specs=[pl.BlockSpec((Np, S, Cp), lambda i: (0, 0, 0))],
        out_specs=pl.BlockSpec((Np, Cp), lambda i: (0, 0)),
    )(xp)
    return out[:N, :C]


# ---------------------------------------------------------------------------
# Conv / pool wrappers (im2col glue in plain JAX, compute in Pallas)
# ---------------------------------------------------------------------------
def conv_bn_act(x, w, scale, shift, *, stride, padding, relu, residual=None):
    """x: (N,H,W,Cin) NHWC (bf16), w: (kh,kw,Cin,Cout).  BN folded into scale/shift.
    If `residual` is given, the residual add + ReLU are fused into the matmul epilogue."""
    N, H, W, Cin = x.shape
    kh, kw, _, Cout = w.shape
    xb = x.astype(jnp.bfloat16)
    xp = jnp.pad(xb, ((0, 0), (padding, padding), (padding, padding), (0, 0)))
    Ho = (H + 2 * padding - kh) // stride + 1
    Wo = (W + 2 * padding - kw) // stride + 1
    cols = []
    for i in range(kh):
        for j in range(kw):
            cols.append(xp[:, i:i + (Ho - 1) * stride + 1:stride,
                            j:j + (Wo - 1) * stride + 1:stride, :])
    patches = jnp.concatenate(cols, axis=-1).reshape(N * Ho * Wo, kh * kw * Cin)
    wmat = w.reshape(kh * kw * Cin, Cout)
    res2d = None if residual is None else residual.reshape(N * Ho * Wo, Cout)
    out = matmul_bn_act(patches, wmat, scale, shift, res2d, relu=relu)
    return out.reshape(N, Ho, Wo, Cout)


def maxpool_3x3_s2(x):
    N, H, W, C = x.shape
    k, s, pad = 3, 2, 1
    xp = jnp.pad(x.astype(jnp.bfloat16),
                 ((0, 0), (pad, pad), (pad, pad), (0, 0)),
                 constant_values=-jnp.inf)
    Ho = (H + 2 * pad - k) // s + 1
    Wo = (W + 2 * pad - k) // s + 1
    views = []
    for i in range(k):
        for j in range(k):
            views.append(xp[:, i:i + (Ho - 1) * s + 1:s,
                             j:j + (Wo - 1) * s + 1:s, :])
    stacked = jnp.stack(views, axis=0).reshape(9, N * Ho * Wo, C)
    return maxpool9(stacked).reshape(N, Ho, Wo, C)


# ---------------------------------------------------------------------------
# ResNet-18 trunk (children()[:-1]: conv1,bn1,relu,maxpool,layer1..4,avgpool)
# ---------------------------------------------------------------------------
def basic_block(x, p):
    s = p["stride"]
    if "down_w" in p:
        identity = conv_bn_act(x, p["down_w"], *p["down_bn"],
                               stride=s, padding=0, relu=False)
    else:
        identity = x
    out = conv_bn_act(x, p["conv1_w"], *p["bn1"], stride=s, padding=1, relu=True)
    # residual add + ReLU fused into this conv's epilogue
    out = conv_bn_act(out, p["conv2_w"], *p["bn2"], stride=1, padding=1,
                      relu=True, residual=identity)
    return out


def resnet_trunk(x, p):
    x = conv_bn_act(x, p["conv1_w"], *p["bn1"], stride=2, padding=3, relu=True)
    x = maxpool_3x3_s2(x)
    for layer in p["layers"]:
        for blk in layer:
            x = basic_block(x, blk)
    N, H, W, C = x.shape
    return avgpool_spatial(x.reshape(N, H * W, C))  # (N, 512)


def two_networks_forward(inputs1_nchw, inputs2_nchw, params):
    # layout: convert PyTorch NCHW -> NHWC (bf16) for the TPU kernels.
    x1 = jnp.transpose(inputs1_nchw, (0, 2, 3, 1)).astype(jnp.bfloat16)
    x2 = jnp.transpose(inputs2_nchw, (0, 2, 3, 1)).astype(jnp.bfloat16)
    f1 = resnet_trunk(x1, params["net1"])          # (N, 512) bf16
    f2 = resnet_trunk(x2, params["net2"])          # (N, 512) bf16
    feats = jnp.concatenate([f1, f2], axis=1)      # == cat(dim=1).squeeze() for N>1
    ones = jnp.ones((params["fc_w"].shape[1],), jnp.float32)
    return matmul_bn_act(feats, params["fc_w"], ones, params["fc_b"],
                         relu=False, out_dtype=jnp.float32)


# ---------------------------------------------------------------------------
# Deterministic synthetic parameters (shapes from torchvision resnet18)
# ---------------------------------------------------------------------------
def make_bn(key, c):
    k1, k2, k3, k4 = jax.random.split(key, 4)
    gamma = 1.0 + 0.1 * jax.random.normal(k1, (c,), jnp.float32)
    beta = 0.1 * jax.random.normal(k2, (c,), jnp.float32)
    mean = 0.1 * jax.random.normal(k3, (c,), jnp.float32)
    var = 1.0 + 0.1 * jax.random.uniform(k4, (c,), jnp.float32)
    scale = gamma * jax.lax.rsqrt(var + 1e-5)      # eval-mode BN folded
    shift = beta - mean * scale
    return scale, shift


def make_conv(key, kh, kw, cin, cout):
    fan_in = kh * kw * cin
    return jax.random.normal(key, (kh, kw, cin, cout), jnp.float32) * jnp.sqrt(2.0 / fan_in)


def make_block(key, cin, cout, stride):
    ks = jax.random.split(key, 6)
    p = {
        "stride": stride,
        "conv1_w": make_conv(ks[0], 3, 3, cin, cout),
        "bn1": make_bn(ks[1], cout),
        "conv2_w": make_conv(ks[2], 3, 3, cout, cout),
        "bn2": make_bn(ks[3], cout),
    }
    if stride != 1 or cin != cout:
        p["down_w"] = make_conv(ks[4], 1, 1, cin, cout)
        p["down_bn"] = make_bn(ks[5], cout)
    return p


def make_resnet18(key, in_ch):
    ks = jax.random.split(key, 10)
    p = {"conv1_w": make_conv(ks[0], 7, 7, in_ch, 64), "bn1": make_bn(ks[1], 64)}
    cfg = [(64, 64, 1), (64, 128, 2), (128, 256, 2), (256, 512, 2)]
    layers, ki = [], 2
    for (cin, cout, s) in cfg:
        layers.append([make_block(ks[ki], cin, cout, s),
                       make_block(ks[ki + 1], cout, cout, 1)])
        ki += 2
    p["layers"] = layers
    return p


if __name__ == "__main__":
    key = jax.random.PRNGKey(0)
    k_in1, k_in2, k_n1, k_n2, k_fcw, k_fcb = jax.random.split(key, 6)

    N, H, W = 2, 64, 64
    num_classes = 20  # get_classes_list() -> 20 PASCAL-VOC classes

    # PyTorch-layout (NCHW) example inputs: RGB for net1, single-channel for net2.
    inputs1 = jax.random.normal(k_in1, (N, 3, H, W), jnp.float32)
    inputs2 = jax.random.normal(k_in2, (N, 1, H, W), jnp.float32)

    in_features = 2 * 512
    bound = 1.0 / jnp.sqrt(in_features)
    params = {
        "net1": make_resnet18(k_n1, 3),
        "net2": make_resnet18(k_n2, 1),
        # stored as (in_features, num_classes) == torch Linear weight transposed
        "fc_w": jax.random.uniform(k_fcw, (in_features, num_classes), jnp.float32,
                                   -bound, bound),
        "fc_b": jax.random.uniform(k_fcb, (num_classes,), jnp.float32, -bound, bound),
    }

    logits = two_networks_forward(inputs1, inputs2, params)
    logits = jax.block_until_ready(logits)

    assert logits.shape == (N, num_classes), logits.shape
    assert bool(jnp.all(jnp.isfinite(logits)))
    print("KERNEL_OK")
</pallas_src>

<mosaic_0001>
module attributes {stable_mosaic.version = 11 : i64} {
  func.func @_matmul_bn_act_kernel(%arg0: i32, %arg1: i32, %arg2: i32, %arg3: memref<512x256xbf16, #tpu.memory_space<vmem>>, %arg4: memref<256x128xbf16, #tpu.memory_space<vmem>>, %arg5: memref<1x128xf32, #tpu.memory_space<vmem>>, %arg6: memref<1x128xf32, #tpu.memory_space<vmem>>, %arg7: memref<512x128xbf16, #tpu.memory_space<vmem>>, %arg8: memref<512x128xf32, #tpu.memory_space<vmem>>) attributes {dimension_semantics = [#tpu.dimension_semantics<parallel>, #tpu.dimension_semantics<parallel>, #tpu.dimension_semantics<arbitrary>], iteration_bounds = array<i64: 4, 1, 1>, scalar_prefetch = 0 : i64, scratch_operands = 1 : i64, tpu.core_type = #tpu.core_type<tc>, window_params = [{transform_indices = @transform_0, window_bounds = array<i64: 512, 256>}, {transform_indices = @transform_1, window_bounds = array<i64: 256, 128>}, {transform_indices = @transform_2, window_bounds = array<i64: 1, 128>}, {transform_indices = @transform_3, window_bounds = array<i64: 1, 128>}, {transform_indices = @transform_4, window_bounds = array<i64: 512, 128>}]} {
    %c0_i32 = arith.constant 0 : i32
    %0 = arith.cmpi eq, %arg2, %c0_i32 : i32
    %1 = arith.extui %0 : i1 to i32
    %c0_i32_0 = arith.constant 0 : i32
    %2 = arith.cmpi ne, %1, %c0_i32_0 : i32
    scf.if %2 {
      %cst_10 = arith.constant 0.000000e+00 : f32
      %12 = vector.broadcast %cst_10 : f32 to vector<512x128xf32>
      %c0_11 = arith.constant 0 : index
      %c0_12 = arith.constant 0 : index
      %13 = vector.load %arg8[%c0_11, %c0_12] : memref<512x128xf32, #tpu.memory_space<vmem>>, vector<512x128xf32>
      tpu.vector_store %arg8[%c0_11, %c0_12], %12 {strides = array<i32>} : memref<512x128xf32, #tpu.memory_space<vmem>>, vector<512x128xf32>,
    } else {
    }
    %c0 = arith.constant 0 : index
    %c0_1 = arith.constant 0 : index
    %3 = vector.load %arg8[%c0, %c0_1] : memref<512x128xf32, #tpu.memory_space<vmem>>, vector<512x128xf32>
    %c0_2 = arith.constant 0 : index
    %c0_3 = arith.constant 0 : index
    %4 = vector.load %arg3[%c0_2, %c0_3] : memref<512x256xbf16, #tpu.memory_space<vmem>>, vector<512x256xbf16>
    %c0_4 = arith.constant 0 : index
    %c0_5 = arith.constant 0 : index
    %5 = vector.load %arg4[%c0_4, %c0_5] : memref<256x128xbf16, #tpu.memory_space<vmem>>, vector<256x128xbf16>
    %cst = arith.constant dense<0.000000e+00> : vector<512x128xf32>
    %6 = tpu.matmul %4, %5, %cst {dimension_numbers = #tpu.dot_dimension_numbers<[1], [0], [0], [1], [0, 0, 1, 1], [], []>} : vector<512x256xbf16>, vector<256x128xbf16>, vector<512x128xf32> -> vector<512x128xf32>
    %7 = arith.addf %3, %6 : vector<512x128xf32>
    %c0_6 = arith.constant 0 : index
    %c0_7 = arith.constant 0 : index
    %8 = vector.load %arg8[%c0_6, %c0_7] : memref<512x128xf32, #tpu.memory_space<vmem>>, vector<512x128xf32>
    tpu.vector_store %arg8[%c0_6, %c0_7], %7 {strides = array<i32>} : memref<512x128xf32, #tpu.memory_space<vmem>>, vector<512x128xf32>,
    %c0_i32_8 = arith.constant 0 : i32
    %9 = arith.cmpi eq, %arg2, %c0_i32_8 : i32
    %10 = arith.extui %9 : i1 to i32
    %c0_i32_9 = arith.constant 0 : i32
    %11 = arith.cmpi ne, %10, %c0_i32_9 : i32
    scf.if %11 {
      %c0_10 = arith.constant 0 : index
      %c0_11 = arith.constant 0 : index
      %12 = vector.load %arg8[%c0_10, %c0_11] : memref<512x128xf32, #tpu.memory_space<vmem>>, vector<512x128xf32>
      %c0_12 = arith.constant 0 : index
      %c0_13 = arith.constant 0 : index
      %13 = vector.load %arg5[%c0_12, %c0_13] : memref<1x128xf32, #tpu.memory_space<vmem>>, vector<1x128xf32>
      %14 = vector.broadcast %13 : vector<1x128xf32> to vector<512x128xf32>
      %15 = arith.mulf %12, %14 : vector<512x128xf32>
      %c0_14 = arith.constant 0 : index
      %c0_15 = arith.constant 0 : index
      %16 = vector.load %arg6[%c0_14, %c0_15] : memref<1x128xf32, #tpu.memory_space<vmem>>, vector<1x128xf32>
      %17 = vector.broadcast %16 : vector<1x128xf32> to vector<512x128xf32>
      %18 = arith.addf %15, %17 : vector<512x128xf32>
      %cst_16 = arith.constant 0.000000e+00 : f32
      %19 = vector.broadcast %cst_16 : f32 to vector<512x128xf32>
      %20 = arith.maximumf %18, %19 : vector<512x128xf32>
      %21 = arith.truncf %20 : vector<512x128xf32> to vector<512x128xbf16>
      %c0_17 = arith.constant 0 : index
      %c0_18 = arith.constant 0 : index
      %22 = vector.load %arg7[%c0_17, %c0_18] : memref<512x128xbf16, #tpu.memory_space<vmem>>, vector<512x128xbf16>
      tpu.vector_store %arg7[%c0_17, %c0_18], %21 {strides = array<i32>} : memref<512x128xbf16, #tpu.memory_space<vmem>>, vector<512x128xbf16>,
    } else {
    }
    return
  }
  func.func @transform_0(%arg0: i32, %arg1: i32, %arg2: i32) -> (i32, i32) {
    %c0_i32 = arith.constant 0 : i32
    return %arg0, %arg2 : i32, i32
  }
  func.func @transform_1(%arg0: i32, %arg1: i32, %arg2: i32) -> (i32, i32) {
    %c0_i32 = arith.constant 0 : i32
    return %arg2, %arg1 : i32, i32
  }
  func.func @transform_2(%arg0: i32, %arg1: i32, %arg2: i32) -> (i32, i32) {
    %c0_i32 = arith.constant 0 : i32
    %c0_i32_0 = arith.constant 0 : i32
    return %c0_i32, %arg1 : i32, i32
  }
  func.func @transform_3(%arg0: i32, %arg1: i32, %arg2: i32) -> (i32, i32) {
    %c0_i32 = arith.constant 0 : i32
    %c0_i32_0 = arith.constant 0 : i32
    return %c0_i32, %arg1 : i32, i32
  }
  func.func @transform_4(%arg0: i32, %arg1: i32, %arg2: i32) -> (i32, i32) {
    %c0_i32 = arith.constant 0 : i32
    return %arg0, %arg1 : i32, i32
  }
}

</mosaic_0001>

<llo_original>
// kernel: matmul_bn_act.1
$region0: #{matmul_bn_act.1}
  #allocation0 [shape = 'u32[]', space=smem, size = 0x4, offset = 0x4, fixed_abs, tag = 'smem constant byte address 0x4 - core index']
  #allocation1 [shape = 'u32[144,128]{1,0:T(1,128)}', space=vmem, size = 0x12000, scoped, tag = 'internal scratch']
  #allocation2 [shape = 'f32[512,128]{1,0:T(8,128)}', space=vmem, size = 0x40000, scoped, tag = 'scratch operand']
  %s0 = inlined_call_operand.vmem [shape: bf16[2048,256], index: 0, kind: input, shape index: {}]
  %s1 = inlined_call_operand.vmem [shape: bf16[256,128], index: 1, kind: input, shape index: {}]
  %s2 = inlined_call_operand.vmem [shape: f32[1,128], index: 2, kind: input, shape index: {}]
  %s3 = inlined_call_operand.vmem [shape: f32[1,128], index: 3, kind: input, shape index: {}]
  %s4 = inlined_call_operand.vmem [shape: bf16[2048,128], index: 4, kind: output, shape index: {}]
  %s5 = sld [smem:[#allocation0]]
  $region57: #{matmul_bn_act.1} parent=0
    _
  %s7 = ssub.s32 1, %s5
  %s8 = scalar_select 0, %s7, %s5
  loop: start=0, step=1, limit=6
  $region2: #{matmul_bn_act.1} parent=0 // loop_pre_header
    _
  $region3: #{matmul_bn_act.1} parent=0 // loop_header
    %s10 = sphi 0, %s14
    %p11 = scmp.ge.s32.totalorder %s10, 6
    %s17 = sphi 0, %s36
    %s18 = sphi 0, %s32
    %s19 = sphi 0, %s28
    %s20 = sphi 0, %s17
    %s21 = sphi 0, %s18
    %s22 = sphi 0, %s19
    %s23 = sphi 0, %s20
    %s24 = sphi 0, %s21
    %s25 = sphi 0, %s22
    %s41 = sphi 0, %s43
    %s44 = sphi 0, %s41
    %s45 = sphi 0, %s44
    %s61 = sphi 0, %s45
    %s69 = sphi 0, %s71
    %s72 = sphi 0, %s69
    %s73 = sphi 0, %s72
    %s89 = sphi 0, %s73
    %s95 = sphi 0, %s97
    %s98 = sphi 0, %s95
    %s99 = sphi 0, %s98
    %s115 = sphi 0, %s99
    %s121 = sphi 0, %s123
    %s124 = sphi 0, %s121
    %s125 = sphi 0, %s124
    %s141 = sphi 0, %s125
    %s149 = sphi 0, %s151
    %s152 = sphi 0, %s149
    %s153 = sphi 0, %s152
    %s169 = sphi 0, %s153
  $region4: #{matmul_bn_act.1} parent=0 // loop_header_branch
    %13 = sbr.rel (%p11) target = $region8
  $region5: #{matmul_bn_act.1} parent=0 // loop_body
    %s15 = ssub.s32 %s10, 1
    %s16 = ssub.s32 %s10, 2
    %s26 = sadd.s32 1, %s19
    %p27 = scmp.ge.s32.totalorder %s26, 1
    %s28 = scalar_select %p27, 0, %s26
    %s29 = sadd.s32 1, %s18
    %s30 = scalar_select %p27, %s29, %s18
    %p31 = scmp.ge.s32.totalorder %s30, 1
    %s32 = scalar_select %p31, 0, %s30
    %s33 = sadd.s32 1, %s17
    %s34 = scalar_select %p31, %s33, %s17
    %p35 = scmp.ge.s32.totalorder %s34, 4
    %s36 = scalar_select %p35, 0, %s34
    %s37 = ssub.s32 %s17, %s36
    %s38 = ssub.s32 %s19, %s28
    %s39 = sor.u32 %s37, %s38
    %p40 = scmp.eq.s32.totalorder %s39, 0
    %s42 = sadd.s32 %s41, 1
    %s43 = scalar_select %p40, %s41, %s42
    %p46 = pneg %p40
    %p47 = scmp.eq.s32.totalorder %s10, 3
    %p48 = por %p46, %p47
    %p49 = scmp.ne.s32.totalorder %s41, %s44
    %p50 = scmp.eq.s32.totalorder %s10, 0
    %p51 = por %p49, %p50
    %p52 = scmp.ne.s32.totalorder %s41, %s44
    %p53 = scmp.eq.s32.totalorder %s15, 3
    %p54 = por %p52, %p53
    %p55 = scmp.ne.s32.totalorder %s44, %s45
    %p56 = scmp.eq.s32.totalorder %s15, 0
    %p57 = por %p55, %p56
    %p58 = scmp.ne.s32.totalorder %s44, %s45
    %p59 = scmp.eq.s32.totalorder %s16, 3
    %p60 = por %p58, %p59
    %p62 = scmp.ne.s32.totalorder %s45, %s61
    %p63 = scmp.eq.s32.totalorder %s16, 0
    %p64 = por %p62, %p63
    %s65 = ssub.s32 %s19, %s28
    %s66 = ssub.s32 %s18, %s32
    %s67 = sor.u32 %s65, %s66
    %p68 = scmp.eq.s32.totalorder %s67, 0
    %s70 = sadd.s32 %s69, 1
    %s71 = scalar_select %p68, %s69, %s70
    %p74 = pneg %p68
    %p75 = scmp.eq.s32.totalorder %s10, 3
    %p76 = por %p74, %p75
    %p77 = scmp.ne.s32.totalorder %s69, %s72
    %p78 = scmp.eq.s32.totalorder %s10, 0
    %p79 = por %p77, %p78
    %p80 = scmp.ne.s32.totalorder %s69, %s72
    %p81 = scmp.eq.s32.totalorder %s15, 3
    %p82 = por %p80, %p81
    %p83 = scmp.ne.s32.totalorder %s72, %s73
    %p84 = scmp.eq.s32.totalorder %s15, 0
    %p85 = por %p83, %p84
    %p86 = scmp.ne.s32.totalorder %s72, %s73
    %p87 = scmp.eq.s32.totalorder %s16, 3
    %p88 = por %p86, %p87
    %p90 = scmp.ne.s32.totalorder %s73, %s89
    %p91 = scmp.eq.s32.totalorder %s16, 0
    %p92 = por %p90, %p91
    %s93 = ssub.s32 %s18, %s32
    %p94 = scmp.eq.s32.totalorder %s93, 0
    %s96 = sadd.s32 %s95, 1
    %s97 = scalar_select %p94, %s95, %s96
    %p100 = pneg %p94
    %p101 = scmp.eq.s32.totalorder %s10, 3
    %p102 = por %p100, %p101
    %p103 = scmp.ne.s32.totalorder %s95, %s98
    %p104 = scmp.eq.s32.totalorder %s10, 0
    %p105 = por %p103, %p104
    %p106 = scmp.ne.s32.totalorder %s95, %s98
    %p107 = scmp.eq.s32.totalorder %s15, 3
    %p108 = por %p106, %p107
    %p109 = scmp.ne.s32.totalorder %s98, %s99
    %p110 = scmp.eq.s32.totalorder %s15, 0
    %p111 = por %p109, %p110
    %p112 = scmp.ne.s32.totalorder %s98, %s99
    %p113 = scmp.eq.s32.totalorder %s16, 3
    %p114 = por %p112, %p113
    %p116 = scmp.ne.s32.totalorder %s99, %s115
    %p117 = scmp.eq.s32.totalorder %s16, 0
    %p118 = por %p116, %p117
    %s119 = ssub.s32 %s18, %s32
    %p120 = scmp.eq.s32.totalorder %s119, 0
    %s122 = sadd.s32 %s121, 1
    %s123 = scalar_select %p120, %s121, %s122
    %p126 = pneg %p120
    %p127 = scmp.eq.s32.totalorder %s10, 3
    %p128 = por %p126, %p127
    %p129 = scmp.ne.s32.totalorder %s121, %s124
    %p130 = scmp.eq.s32.totalorder %s10, 0
    %p131 = por %p129, %p130
    %p132 = scmp.ne.s32.totalorder %s121, %s124
    %p133 = scmp.eq.s32.totalorder %s15, 3
    %p134 = por %p132, %p133
    %p135 = scmp.ne.s32.totalorder %s124, %s125
    %p136 = scmp.eq.s32.totalorder %s15, 0
    %p137 = por %p135, %p136
    %p138 = scmp.ne.s32.totalorder %s124, %s125
    %p139 = scmp.eq.s32.totalorder %s16, 3
    %p140 = por %p138, %p139
    %p142 = scmp.ne.s32.totalorder %s125, %s141
    %p143 = scmp.eq.s32.totalorder %s16, 0
    %p144 = por %p142, %p143
    %s145 = ssub.s32 %s17, %s36
    %s146 = ssub.s32 %s18, %s32
    %s147 = sor.u32 %s145, %s146
    %p148 = scmp.eq.s32.totalorder %s147, 0
    %s150 = sadd.s32 %s149, 1
    %s151 = scalar_select %p148, %s149, %s150
    %p154 = pneg %p148
    %p155 = scmp.eq.s32.totalorder %s10, 3
    %p156 = por %p154, %p155
    %p157 = scmp.ne.s32.totalorder %s149, %s152
    %p158 = scmp.eq.s32.totalorder %s10, 0
    %p159 = por %p157, %p158
    %p160 = scmp.ne.s32.totalorder %s149, %s152
    %p161 = scmp.eq.s32.totalorder %s15, 3
    %p162 = por %p160, %p161
    %p163 = scmp.ne.s32.totalorder %s152, %s153
    %p164 = scmp.eq.s32.totalorder %s15, 0
    %p165 = por %p163, %p164
    %p166 = scmp.ne.s32.totalorder %s152, %s153
    %p167 = scmp.eq.s32.totalorder %s16, 3
    %p168 = por %p166, %p167
    %p170 = scmp.ne.s32.totalorder %s153, %s169
    %p171 = scmp.eq.s32.totalorder %s16, 0
    %p172 = por %p170, %p171
    %p173 = scmp.le.s32.totalorder 1, %s10
    %p174 = scmp.lt.s32.totalorder %s10, 5
    %p175 = pnand %p173, %p174
    %p176 = pneg %p175
    // Predicated region
    $region9: #{matmul_bn_act.1} parent=5 // pred_check
      _
    $region10: #{matmul_bn_act.1} parent=5 // pred_check_branch
      %178 = sbr.rel (%p175) target = $region12
    $region11: #{matmul_bn_act.1} parent=5 // pred_region
      %s179 = ssub.s32 %s10, 1
      // Predicated region
      $region13: #{matmul_bn_act.1} parent=11 // pred_check
        %p180 = pneg %p85
      $region14: #{matmul_bn_act.1} parent=11 // pred_check_branch
        %182 = sbr.rel (%p180) target = $region16
      $region15: #{matmul_bn_act.1} parent=11 // pred_region
        %s183 = smul.u32 32, %s22
        %p184 = scmp.lt.s32.totalorder %s183, 31
        %s185 = scalar_select %p184, %s183, 31
        %p186 = scmp.lt.s32.totalorder %s21, 0
        %s187 = scalar_select %p186, %s21, 0
        %s188 = sadd.s32 %s187, %s185
        %s189 = smul.addr %s188, 4
        %s190 = scalar_lea.vmem %s1, %s189
        %s191 = smul.u32 32, %s22
      $region16: #{matmul_bn_act.1} parent=11 // pred_fallthru
        _
      // Predicated region
      $region17: #{matmul_bn_act.1} parent=11 // pred_check
        %p192 = pneg %p111
      $region18: #{matmul_bn_act.1} parent=11 // pred_check_branch
        %194 = sbr.rel (%p192) target = $region20
      $region19: #{matmul_bn_act.1} parent=11 // pred_region
        %p195 = scmp.lt.s32.totalorder %s21, 0
        %s196 = scalar_select %p195, %s21, 0
        %s197 = scalar_lea.vmem %s2, %s196
      $region20: #{matmul_bn_act.1} parent=11 // pred_fallthru
        _
      // Predicated region
      $region21: #{matmul_bn_act.1} parent=11 // pred_check
        %p198 = pneg %p137
      $region22: #{matmul_bn_act.1} parent=11 // pred_check_branch
        %200 = sbr.rel (%p198) target = $region24
      $region23: #{matmul_bn_act.1} parent=11 // pred_region
        %p201 = scmp.lt.s32.totalorder %s21, 0
        %s202 = scalar_select %p201, %s21, 0
        %s203 = scalar_lea.vmem %s3, %s202
      $region24: #{matmul_bn_act.1} parent=11 // pred_fallthru
        _
    $region12: #{matmul_bn_act.1} parent=5 // pred_fallthru
      _
    %p204 = scmp.lt.s32.totalorder %s10, 4
    // Predicated region
    $region25: #{matmul_bn_act.1} parent=5 // pred_check
      %p205 = pneg %p204
    $region26: #{matmul_bn_act.1} parent=5 // pred_check_branch
      %207 = sbr.rel (%p205) target = $region28
    $region27: #{matmul_bn_act.1} parent=5 // pred_region
      // Predicated region
      $region29: #{matmul_bn_act.1} parent=27 // pred_check
        %p208 = pneg %p51
      $region30: #{matmul_bn_act.1} parent=27 // pred_check_branch
        %210 = sbr.rel (%p208) target = $region32
      $region31: #{matmul_bn_act.1} parent=27 // pred_region
        %s211 = smul.u32 64, %s17
        %s212 = smul.u32 2, %s19
        %p213 = scmp.lt.s32.totalorder %s211, 255
        %s214 = scalar_select %p213, %s211, 255
        %p215 = scmp.lt.s32.totalorder %s212, 1
        %s216 = scalar_select %p215, %s212, 1
        %s217 = smul.addr %s214, 2
        %s218 = sadd.s32 %s216, %s217
        %s219 = smul.addr %s218, 4
        %s220 = scalar_lea.vmem %s0, %s219
        %s221 = smul.u32 64, %s17
        %s222 = smul.u32 2, %s19
      $region32: #{matmul_bn_act.1} parent=27 // pred_fallthru
        _
    $region28: #{matmul_bn_act.1} parent=5 // pred_fallthru
      _
    %p223 = scmp.le.s32.totalorder 1, %s10
    %p224 = scmp.lt.s32.totalorder %s10, 5
    %p225 = pnand %p223, %p224
    %p226 = pneg %p225
    // Predicated region
    $region33: #{matmul_bn_act.1} parent=5 // pred_check
      _
    $region34: #{matmul_bn_act.1} parent=5 // pred_check_branch
      %228 = sbr.rel (%p225) target = $region36
    $region35: #{matmul_bn_act.1} parent=5 // pred_region
      %s229 = ssub.s32 %s10, 1
      %s230 = smul.u32 64, %s20
      %s231 = smul.u32 2, %s22
      %p232 = scmp.lt.s32.totalorder %s230, 255
      %s233 = scalar_select %p232, %s230, 255
      %p234 = scmp.lt.s32.totalorder %s231, 1
      %s235 = scalar_select %p234, %s231, 1
      %s236 = smul.addr %s233, 2
      %s237 = sadd.s32 %s235, %s236
      %s238 = smul.addr %s237, 4
      %s239 = scalar_lea.vmem %s0, %s238
      %p240 = pneg %p57
      %p241 = pneg %p54
      %s242 = smul.u32 32, %s22
      %p243 = scmp.lt.s32.totalorder %s242, 31
      %s244 = scalar_select %p243, %s242, 31
      %p245 = scmp.lt.s32.totalorder %s21, 0
      %s246 = scalar_select %p245, %s21, 0
      %s247 = sadd.s32 %s246, %s244
      %s248 = smul.addr %s247, 4
      %s249 = scalar_lea.vmem %s1, %s248
      %p250 = pneg %p85
      %p251 = pneg %p82
      %p252 = scmp.lt.s32.totalorder %s21, 0
      %s253 = scalar_select %p252, %s21, 0
      %s254 = scalar_lea.vmem %s2, %s253
      %p255 = pneg %p111
      %p256 = pneg %p108
      %p257 = scmp.lt.s32.totalorder %s21, 0
      %s258 = scalar_select %p257, %s21, 0
      %s259 = scalar_lea.vmem %s3, %s258
      %p260 = pneg %p137
      %p261 = pneg %p134
      %p262 = pneg %p165
      %p263 = pneg %p162
      %s264 = smul.u32 64, %s20
      %p265 = scmp.lt.s32.totalorder %s264, 255
      %s266 = scalar_select %p265, %s264, 255
      %p267 = scmp.lt.s32.totalorder %s21, 0
      %s268 = scalar_select %p267, %s21, 0
      %s269 = sadd.s32 %s268, %s266
      %s270 = smul.addr %s269, 4
      %s271 = scalar_lea.vmem %s4, %s270
      %s272 = smul.u32 64, %s20
      %s273 = smul.u32 2, %s22
      %p274 = scmp.lt.s32.totalorder %s272, 255
      %s275 = scalar_select %p274, %s272, 255
      %p276 = scmp.lt.s32.totalorder %s273, 1
      %s277 = scalar_select %p276, %s273, 1
      %s278 = smul.addr %s275, 2
      %s279 = sadd.s32 %s277, %s278
      %s280 = smul.addr %s279, 4
      %s281 = scalar_lea.vmem %s0, %s280
      %s282 = smul.u32 64, %s20
      %s283 = smul.u32 2, %s22
      %s284 = smul.u32 32, %s22
      %p285 = scmp.lt.s32.totalorder %s284, 31
      %s286 = scalar_select %p285, %s284, 31
      %p287 = scmp.lt.s32.totalorder %s21, 0
      %s288 = scalar_select %p287, %s21, 0
      %s289 = sadd.s32 %s288, %s286
      %s290 = smul.addr %s289, 4
      %s291 = scalar_lea.vmem %s1, %s290
      %s292 = smul.u32 32, %s22
      %p293 = scmp.lt.s32.totalorder %s21, 0
      %s294 = scalar_select %p293, %s21, 0
      %s295 = scalar_lea.vmem %s2, %s294
      %p296 = scmp.lt.s32.totalorder %s21, 0
      %s297 = scalar_select %p296, %s21, 0
      %s298 = scalar_lea.vmem %s3, %s297
      %s299 = smul.u32 64, %s20
      %p300 = scmp.lt.s32.totalorder %s299, 255
      %s301 = scalar_select %p300, %s299, 255
      %p302 = scmp.lt.s32.totalorder %s21, 0
      %s303 = scalar_select %p302, %s21, 0
      %s304 = sadd.s32 %s303, %s301
      %s305 = smul.addr %s304, 4
      %s306 = scalar_lea.vmem %s4, %s305
      %s307 = smul.u32 64, %s20
      %p309 = scmp.eq.s32.totalorder %s22, 0
      // Predicated region
      $region37: #{matmul_bn_act.1} parent=35 // pred_check
        %p310 = pneg %p309
      $region38: #{matmul_bn_act.1} parent=35 // pred_check_branch
        %312 = sbr.rel (%p310) target = $region40
      $region39: #{matmul_bn_act.1} parent=35 // pred_region
        %313 = vst [vmem:[#allocation2] sm:$0xff] 0.0
        %314 = vst [vmem:[#allocation2 + $0x8] sm:$0xff] 0.0
        %315 = vst [vmem:[#allocation2 + $0x10] sm:$0xff] 0.0
        %316 = vst [vmem:[#allocation2 + $0x18] sm:$0xff] 0.0
        %317 = vst [vmem:[#allocation2 + $0x20] sm:$0xff] 0.0
        %318 = vst [vmem:[#allocation2 + $0x28] sm:$0xff] 0.0
        %319 = vst [vmem:[#allocation2 + $0x30] sm:$0xff] 0.0
        %320 = vst [vmem:[#allocation2 + $0x38] sm:$0xff] 0.0
        %321 = vst [vmem:[#allocation2 + $0x40] sm:$0xff] 0.0
        %322 = vst [vmem:[#allocation2 + $0x48] sm:$0xff] 0.0
        %323 = vst [vmem:[#allocation2 + $0x50] sm:$0xff] 0.0
        %324 = vst [vmem:[#allocation2 + $0x58] sm:$0xff] 0.0
        %325 = vst [vmem:[#allocation2 + $0x60] sm:$0xff] 0.0
        %326 = vst [vmem:[#allocation2 + $0x68] sm:$0xff] 0.0
        %327 = vst [vmem:[#allocation2 + $0x70] sm:$0xff] 0.0
        %328 = vst [vmem:[#allocation2 + $0x78] sm:$0xff] 0.0
        %329 = vst [vmem:[#allocation2 + $0x80] sm:$0xff] 0.0
        %330 = vst [vmem:[#allocation2 + $0x88] sm:$0xff] 0.0
        %331 = vst [vmem:[#allocation2 + $0x90] sm:$0xff] 0.0
        %332 = vst [vmem:[#allocation2 + $0x98] sm:$0xff] 0.0
        %333 = vst [vmem:[#allocation2 + $0xa0] sm:$0xff] 0.0
        %334 = vst [vmem:[#allocation2 + $0xa8] sm:$0xff] 0.0
        %335 = vst [vmem:[#allocation2 + $0xb0] sm:$0xff] 0.0
        %336 = vst [vmem:[#allocation2 + $0xb8] sm:$0xff] 0.0
        %337 = vst [vmem:[#allocation2 + $0xc0] sm:$0xff] 0.0
        %338 = vst [vmem:[#allocation2 + $0xc8] sm:$0xff] 0.0
        %339 = vst [vmem:[#allocation2 + $0xd0] sm:$0xff] 0.0
        %340 = vst [vmem:[#allocation2 + $0xd8] sm:$0xff] 0.0
        %341 = vst [vmem:[#allocation2 + $0xe0] sm:$0xff] 0.0
        %342 = vst [vmem:[#allocation2 + $0xe8] sm:$0xff] 0.0
        %343 = vst [vmem:[#allocation2 + $0xf0] sm:$0xff] 0.0
        %344 = vst [vmem:[#allocation2 + $0xf8] sm:$0xff] 0.0
        %345 = vst [vmem:[#allocation2 + $0x100] sm:$0xff] 0.0
        %346 = vst [vmem:[#allocation2 + $0x108] sm:$0xff] 0.0
        %347 = vst [vmem:[#allocation2 + $0x110] sm:$0xff] 0.0
        %348 = vst [vmem:[#allocation2 + $0x118] sm:$0xff] 0.0
        %349 = vst [vmem:[#allocation2 + $0x120] sm:$0xff] 0.0
        %350 = vst [vmem:[#allocation2 + $0x128] sm:$0xff] 0.0
        %351 = vst [vmem:[#allocation2 + $0x130] sm:$0xff] 0.0
        %352 = vst [vmem:[#allocation2 + $0x138] sm:$0xff] 0.0
        %353 = vst [vmem:[#allocation2 + $0x140] sm:$0xff] 0.0
        %354 = vst [vmem:[#allocation2 + $0x148] sm:$0xff] 0.0
        %355 = vst [vmem:[#allocation2 + $0x150] sm:$0xff] 0.0
        %356 = vst [vmem:[#allocation2 + $0x158] sm:$0xff] 0.0
        %357 = vst [vmem:[#allocation2 + $0x160] sm:$0xff] 0.0
        %358 = vst [vmem:[#allocation2 + $0x168] sm:$0xff] 0.0
        %359 = vst [vmem:[#allocation2 + $0x170] sm:$0xff] 0.0
        %360 = vst [vmem:[#allocation2 + $0x178] sm:$0xff] 0.0
        %361 = vst [vmem:[#allocation2 + $0x180] sm:$0xff] 0.0
        %362 = vst [vmem:[#allocation2 + $0x188] sm:$0xff] 0.0
        %363 = vst [vmem:[#allocation2 + $0x190] sm:$0xff] 0.0
        %364 = vst [vmem:[#allocation2 + $0x198] sm:$0xff] 0.0
        %365 = vst [vmem:[#allocation2 + $0x1a0] sm:$0xff] 0.0
        %366 = vst [vmem:[#allocation2 + $0x1a8] sm:$0xff] 0.0
        %367 = vst [vmem:[#allocation2 + $0x1b0] sm:$0xff] 0.0
        %368 = vst [vmem:[#allocation2 + $0x1b8] sm:$0xff] 0.0
        %369 = vst [vmem:[#allocation2 + $0x1c0] sm:$0xff] 0.0
        %370 = vst [vmem:[#allocation2 + $0x1c8] sm:$0xff] 0.0
        %371 = vst [vmem:[#allocation2 + $0x1d0] sm:$0xff] 0.0
        %372 = vst [vmem:[#allocation2 + $0x1d8] sm:$0xff] 0.0
        %373 = vst [vmem:[#allocation2 + $0x1e0] sm:$0xff] 0.0
        %374 = vst [vmem:[#allocation2 + $0x1e8] sm:$0xff] 0.0
        %375 = vst [vmem:[#allocation2 + $0x1f0] sm:$0xff] 0.0
        %376 = vst [vmem:[#allocation2 + $0x1f8] sm:$0xff] 0.0
      $region40: #{matmul_bn_act.1} parent=35 // pred_fallthru
        _
      %v377 = vld [vmem:[#allocation2] sm:$0xff]
      %v378 = vld [vmem:[#allocation2 + $0x8] sm:$0xff]
      %v379 = vld [vmem:[#allocation2 + $0x10] sm:$0xff]
      %v380 = vld [vmem:[#allocation2 + $0x18] sm:$0xff]
      %v381 = vld [vmem:[#allocation2 + $0x20] sm:$0xff]
      %v382 = vld [vmem:[#allocation2 + $0x28] sm:$0xff]
      %v383 = vld [vmem:[#allocation2 + $0x30] sm:$0xff]
      %v384 = vld [vmem:[#allocation2 + $0x38] sm:$0xff]
      %v385 = vld [vmem:[#allocation2 + $0x40] sm:$0xff]
      %v386 = vld [vmem:[#allocation2 + $0x48] sm:$0xff]
      %v387 = vld [vmem:[#allocation2 + $0x50] sm:$0xff]
      %v388 = vld [vmem:[#allocation2 + $0x58] sm:$0xff]
      %v389 = vld [vmem:[#allocation2 + $0x60] sm:$0xff]
      %v390 = vld [vmem:[#allocation2 + $0x68] sm:$0xff]
      %v391 = vld [vmem:[#allocation2 + $0x70] sm:$0xff]
      %v392 = vld [vmem:[#allocation2 + $0x78] sm:$0xff]
      %v393 = vld [vmem:[#allocation2 + $0x80] sm:$0xff]
      %v394 = vld [vmem:[#allocation2 + $0x88] sm:$0xff]
      %v395 = vld [vmem:[#allocation2 + $0x90] sm:$0xff]
      %v396 = vld [vmem:[#allocation2 + $0x98] sm:$0xff]
      %v397 = vld [vmem:[#allocation2 + $0xa0] sm:$0xff]
      %v398 = vld [vmem:[#allocation2 + $0xa8] sm:$0xff]
      %v399 = vld [vmem:[#allocation2 + $0xb0] sm:$0xff]
      %v400 = vld [vmem:[#allocation2 + $0xb8] sm:$0xff]
      %v401 = vld [vmem:[#allocation2 + $0xc0] sm:$0xff]
      %v402 = vld [vmem:[#allocation2 + $0xc8] sm:$0xff]
      %v403 = vld [vmem:[#allocation2 + $0xd0] sm:$0xff]
      %v404 = vld [vmem:[#allocation2 + $0xd8] sm:$0xff]
      %v405 = vld [vmem:[#allocation2 + $0xe0] sm:$0xff]
      %v406 = vld [vmem:[#allocation2 + $0xe8] sm:$0xff]
      %v407 = vld [vmem:[#allocation2 + $0xf0] sm:$0xff]
      %v408 = vld [vmem:[#allocation2 + $0xf8] sm:$0xff]
      %v409 = vld [vmem:[#allocation2 + $0x100] sm:$0xff]
      %v410 = vld [vmem:[#allocation2 + $0x108] sm:$0xff]
      %v411 = vld [vmem:[#allocation2 + $0x110] sm:$0xff]
      %v412 = vld [vmem:[#allocation2 + $0x118] sm:$0xff]
      %v413 = vld [vmem:[#allocation2 + $0x120] sm:$0xff]
      %v414 = vld [vmem:[#allocation2 + $0x128] sm:$0xff]
      %v415 = vld [vmem:[#allocation2 + $0x130] sm:$0xff]
      %v416 = vld [vmem:[#allocation2 + $0x138] sm:$0xff]
      %v417 = vld [vmem:[#allocation2 + $0x140] sm:$0xff]
      %v418 = vld [vmem:[#allocation2 + $0x148] sm:$0xff]
      %v419 = vld [vmem:[#allocation2 + $0x150] sm:$0xff]
      %v420 = vld [vmem:[#allocation2 + $0x158] sm:$0xff]
      %v421 = vld [vmem:[#allocation2 + $0x160] sm:$0xff]
      %v422 = vld [vmem:[#allocation2 + $0x168] sm:$0xff]
      %v423 = vld [vmem:[#allocation2 + $0x170] sm:$0xff]
      %v424 = vld [vmem:[#allocation2 + $0x178] sm:$0xff]
      %v425 = vld [vmem:[#allocation2 + $0x180] sm:$0xff]
      %v426 = vld [vmem:[#allocation2 + $0x188] sm:$0xff]
      %v427 = vld [vmem:[#allocation2 + $0x190] sm:$0xff]
      %v428 = vld [vmem:[#allocation2 + $0x198] sm:$0xff]
      %v429 = vld [vmem:[#allocation2 + $0x1a0] sm:$0xff]
      %v430 = vld [vmem:[#allocation2 + $0x1a8] sm:$0xff]
      %v431 = vld [vmem:[#allocation2 + $0x1b0] sm:$0xff]
      %v432 = vld [vmem:[#allocation2 + $0x1b8] sm:$0xff]
      %v433 = vld [vmem:[#allocation2 + $0x1c0] sm:$0xff]
      %v434 = vld [vmem:[#allocation2 + $0x1c8] sm:$0xff]
      %v435 = vld [vmem:[#allocation2 + $0x1d0] sm:$0xff]
      %v436 = vld [vmem:[#allocation2 + $0x1d8] sm:$0xff]
      %v437 = vld [vmem:[#allocation2 + $0x1e0] sm:$0xff]
      %v438 = vld [vmem:[#allocation2 + $0x1e8] sm:$0xff]
      %v439 = vld [vmem:[#allocation2 + $0x1f0] sm:$0xff]
      %v440 = vld [vmem:[#allocation2 + $0x1f8] sm:$0xff]
      %v441 = vld [vmem:[%s281] sm:$0xff]
      %v442 = vld [vmem:[%s281 + $0x8] sm:$0xff]
      %v443 = vld [vmem:[%s281 + $0x10] sm:$0xff]
      %v444 = vld [vmem:[%s281 + $0x18] sm:$0xff]
      %v445 = vld [vmem:[%s281 + $0x20] sm:$0xff]
      %v446 = vld [vmem:[%s281 + $0x28] sm:$0xff]
      %v447 = vld [vmem:[%s281 + $0x30] sm:$0xff]
      %v448 = vld [vmem:[%s281 + $0x38] sm:$0xff]
      %v449 = vld [vmem:[%s281 + $0x40] sm:$0xff]
      %v450 = vld [vmem:[%s281 + $0x48] sm:$0xff]
      %v451 = vld [vmem:[%s281 + $0x50] sm:$0xff]
      %v452 = vld [vmem:[%s281 + $0x58] sm:$0xff]
      %v453 = vld [vmem:[%s281 + $0x60] sm:$0xff]
      %v454 = vld [vmem:[%s281 + $0x68] sm:$0xff]
      %v455 = vld [vmem:[%s281 + $0x70] sm:$0xff]
      %v456 = vld [vmem:[%s281 + $0x78] sm:$0xff]
      %v457 = vld [vmem:[%s281 + $0x80] sm:$0xff]
      %v458 = vld [vmem:[%s281 + $0x88] sm:$0xff]
      %v459 = vld [vmem:[%s281 + $0x90] sm:$0xff]
      %v460 = vld [vmem:[%s281 + $0x98] sm:$0xff]
      %v461 = vld [vmem:[%s281 + $0xa0] sm:$0xff]
      %v462 = vld [vmem:[%s281 + $0xa8] sm:$0xff]
      %v463 = vld [vmem:[%s281 + $0xb0] sm:$0xff]
      %v464 = vld [vmem:[%s281 + $0xb8] sm:$0xff]
      %v465 = vld [vmem:[%s281 + $0xc0] sm:$0xff]
      %v466 = vld [vmem:[%s281 + $0xc8] sm:$0xff]
      %v467 = vld [vmem:[%s281 + $0xd0] sm:$0xff]
      %v468 = vld [vmem:[%s281 + $0xd8] sm:$0xff]
      %v469 = vld [vmem:[%s281 + $0xe0] sm:$0xff]
      %v470 = vld [vmem:[%s281 + $0xe8] sm:$0xff]
      %v471 = vld [vmem:[%s281 + $0xf0] sm:$0xff]
      %v472 = vld [vmem:[%s281 + $0xf8] sm:$0xff]
      %v473 = vld [vmem:[%s281 + $0x100] sm:$0xff]
      %v474 = vld [vmem:[%s281 + $0x108] sm:$0xff]
      %v475 = vld [vmem:[%s281 + $0x110] sm:$0xff]
      %v476 = vld [vmem:[%s281 + $0x118] sm:$0xff]
      %v477 = vld [vmem:[%s281 + $0x120] sm:$0xff]
      %v478 = vld [vmem:[%s281 + $0x128] sm:$0xff]
      %v479 = vld [vmem:[%s281 + $0x130] sm:$0xff]
      %v480 = vld [vmem:[%s281 + $0x138] sm:$0xff]
      %v481 = vld [vmem:[%s281 + $0x140] sm:$0xff]
      %v482 = vld [vmem:[%s281 + $0x148] sm:$0xff]
      %v483 = vld [vmem:[%s281 + $0x150] sm:$0xff]
      %v484 = vld [vmem:[%s281 + $0x158] sm:$0xff]
      %v485 = vld [vmem:[%s281 + $0x160] sm:$0xff]
      %v486 = vld [vmem:[%s281 + $0x168] sm:$0xff]
      %v487 = vld [vmem:[%s281 + $0x170] sm:$0xff]
      %v488 = vld [vmem:[%s281 + $0x178] sm:$0xff]
      %v489 = vld [vmem:[%s281 + $0x180] sm:$0xff]
      %v490 = vld [vmem:[%s281 + $0x188] sm:$0xff]
      %v491 = vld [vmem:[%s281 + $0x190] sm:$0xff]
      %v492 = vld [vmem:[%s281 + $0x198] sm:$0xff]
      %v493 = vld [vmem:[%s281 + $0x1a0] sm:$0xff]
      %v494 = vld [vmem:[%s281 + $0x1a8] sm:$0xff]
      %v495 = vld [vmem:[%s281 + $0x1b0] sm:$0xff]
      %v496 = vld [vmem:[%s281 + $0x1b8] sm:$0xff]
      %v497 = vld [vmem:[%s281 + $0x1c0] sm:$0xff]
      %v498 = vld [vmem:[%s281 + $0x1c8] sm:$0xff]
      %v499 = vld [vmem:[%s281 + $0x1d0] sm:$0xff]
      %v500 = vld [vmem:[%s281 + $0x1d8] sm:$0xff]
      %v501 = vld [vmem:[%s281 + $0x1e0] sm:$0xff]
      %v502 = vld [vmem:[%s281 + $0x1e8] sm:$0xff]
      %v503 = vld [vmem:[%s281 + $0x1f0] sm:$0xff]
      %v504 = vld [vmem:[%s281 + $0x1f8] sm:$0xff]
      %v505 = vld [vmem:[%s291] sm:$0xf]
      %v506 = vld [vmem:[%s291 + $0x4] sm:$0xf]
      %v507 = vld [vmem:[%s291 + $0x8] sm:$0xf]
      %v508 = vld [vmem:[%s291 + $0xc] sm:$0xf]
      %v509 = vld [vmem:[%s291 + $0x10] sm:$0xf]
      %v510 = vld [vmem:[%s291 + $0x14] sm:$0xf]
      %v511 = vld [vmem:[%s291 + $0x18] sm:$0xf]
      %v512 = vld [vmem:[%s291 + $0x1c] sm:$0xf]
      %v513 = vld [vmem:[%s291 + $0x20] sm:$0xf]
      %v514 = vld [vmem:[%s291 + $0x24] sm:$0xf]
      %v515 = vld [vmem:[%s291 + $0x28] sm:$0xf]
      %v516 = vld [vmem:[%s291 + $0x2c] sm:$0xf]
      %v517 = vld [vmem:[%s291 + $0x30] sm:$0xf]
      %v518 = vld [vmem:[%s291 + $0x34] sm:$0xf]
      %v519 = vld [vmem:[%s291 + $0x38] sm:$0xf]
      %v520 = vld [vmem:[%s291 + $0x3c] sm:$0xf]
      %v521 = vld [vmem:[%s291 + $0x40] sm:$0xf]
      %v522 = vld [vmem:[%s291 + $0x44] sm:$0xf]
      %v523 = vld [vmem:[%s291 + $0x48] sm:$0xf]
      %v524 = vld [vmem:[%s291 + $0x4c] sm:$0xf]
      %v525 = vld [vmem:[%s291 + $0x50] sm:$0xf]
      %v526 = vld [vmem:[%s291 + $0x54] sm:$0xf]
      %v527 = vld [vmem:[%s291 + $0x58] sm:$0xf]
      %v528 = vld [vmem:[%s291 + $0x5c] sm:$0xf]
      %v529 = vld [vmem:[%s291 + $0x60] sm:$0xf]
      %v530 = vld [vmem:[%s291 + $0x64] sm:$0xf]
      %v531 = vld [vmem:[%s291 + $0x68] sm:$0xf]
      %v532 = vld [vmem:[%s291 + $0x6c] sm:$0xf]
      %v533 = vld [vmem:[%s291 + $0x70] sm:$0xf]
      %v534 = vld [vmem:[%s291 + $0x74] sm:$0xf]
      %v535 = vld [vmem:[%s291 + $0x78] sm:$0xf]
      %v536 = vld [vmem:[%s291 + $0x7c] sm:$0xf]
      %v601 = vunpack.c.l.b16 %v441
      %v602 = vunpack.c.h.b16 %v441
      %v603 = vunpack.c.l.b16 %v442
      %v604 = vunpack.c.h.b16 %v442
      %v605 = vunpack.c.l.b16 %v443
      %v606 = vunpack.c.h.b16 %v443
      %v607 = vunpack.c.l.b16 %v444
      %v608 = vunpack.c.h.b16 %v444
      %v609 = vunpack.c.l.b16 %v445
      %v610 = vunpack.c.h.b16 %v445
      %v611 = vunpack.c.l.b16 %v446
      %v612 = vunpack.c.h.b16 %v446
      %v613 = vunpack.c.l.b16 %v447
      %v614 = vunpack.c.h.b16 %v447
      %v615 = vunpack.c.l.b16 %v448
      %v616 = vunpack.c.h.b16 %v448
      %v617 = vunpack.c.l.b16 %v449
      %v618 = vunpack.c.h.b16 %v449
      %v619 = vunpack.c.l.b16 %v450
      %v620 = vunpack.c.h.b16 %v450
      %v621 = vunpack.c.l.b16 %v451
      %v622 = vunpack.c.h.b16 %v451
      %v623 = vunpack.c.l.b16 %v452
      %v624 = vunpack.c.h.b16 %v452
      %v625 = vunpack.c.l.b16 %v453
      %v626 = vunpack.c.h.b16 %v453
      %v627 = vunpack.c.l.b16 %v454
      %v628 = vunpack.c.h.b16 %v454
      %v629 = vunpack.c.l.b16 %v455
      %v630 = vunpack.c.h.b16 %v455
      %v631 = vunpack.c.l.b16 %v456
      %v632 = vunpack.c.h.b16 %v456
      %v633 = vunpack.c.l.b16 %v457
      %v634 = vunpack.c.h.b16 %v457
      %v635 = vunpack.c.l.b16 %v458
      %v636 = vunpack.c.h.b16 %v458
      %v637 = vunpack.c.l.b16 %v459
      %v638 = vunpack.c.h.b16 %v459
      %v639 = vunpack.c.l.b16 %v460
      %v640 = vunpack.c.h.b16 %v460
      %v641 = vunpack.c.l.b16 %v461
      %v642 = vunpack.c.h.b16 %v461
      %v643 = vunpack.c.l.b16 %v462
      %v644 = vunpack.c.h.b16 %v462
      %v645 = vunpack.c.l.b16 %v463
      %v646 = vunpack.c.h.b16 %v463
      %v647 = vunpack.c.l.b16 %v464
      %v648 = vunpack.c.h.b16 %v464
      %v649 = vunpack.c.l.b16 %v465
      %v650 = vunpack.c.h.b16 %v465
      %v651 = vunpack.c.l.b16 %v466
      %v652 = vunpack.c.h.b16 %v466
      %v653 = vunpack.c.l.b16 %v467
      %v654 = vunpack.c.h.b16 %v467
      %v655 = vunpack.c.l.b16 %v468
      %v656 = vunpack.c.h.b16 %v468
      %v657 = vunpack.c.l.b16 %v469
      %v658 = vunpack.c.h.b16 %v469
      %v659 = vunpack.c.l.b16 %v470
      %v660 = vunpack.c.h.b16 %v470
      %v661 = vunpack.c.l.b16 %v471
      %v662 = vunpack.c.h.b16 %v471
      %v663 = vunpack.c.l.b16 %v472
      %v664 = vunpack.c.h.b16 %v472
      %v665 = vunpack.c.l.b16 %v473
      %v666 = vunpack.c.h.b16 %v473
      %v667 = vunpack.c.l.b16 %v474
      %v668 = vunpack.c.h.b16 %v474
      %v669 = vunpack.c.l.b16 %v475
      %v670 = vunpack.c.h.b16 %v475
      %v671 = vunpack.c.l.b16 %v476
      %v672 = vunpack.c.h.b16 %v476
      %v673 = vunpack.c.l.b16 %v477
      %v674 = vunpack.c.h.b16 %v477
      %v675 = vunpack.c.l.b16 %v478
      %v676 = vunpack.c.h.b16 %v478
      %v677 = vunpack.c.l.b16 %v479
      %v678 = vunpack.c.h.b16 %v479
      %v679 = vunpack.c.l.b16 %v480
      %v680 = vunpack.c.h.b16 %v480
      %v681 = vunpack.c.l.b16 %v481
      %v682 = vunpack.c.h.b16 %v481
      %v683 = vunpack.c.l.b16 %v482
      %v684 = vunpack.c.h.b16 %v482
      %v685 = vunpack.c.l.b16 %v483
      %v686 = vunpack.c.h.b16 %v483
      %v687 = vunpack.c.l.b16 %v484
      %v688 = vunpack.c.h.b16 %v484
      %v689 = vunpack.c.l.b16 %v485
      %v690 = vunpack.c.h.b16 %v485
      %v691 = vunpack.c.l.b16 %v486
      %v692 = vunpack.c.h.b16 %v486
      %v693 = vunpack.c.l.b16 %v487
      %v694 = vunpack.c.h.b16 %v487
      %v695 = vunpack.c.l.b16 %v488
      %v696 = vunpack.c.h.b16 %v488
      %v697 = vunpack.c.l.b16 %v489
      %v698 = vunpack.c.h.b16 %v489
      %v699 = vunpack.c.l.b16 %v490
      %v700 = vunpack.c.h.b16 %v490
      %v701 = vunpack.c.l.b16 %v491
      %v702 = vunpack.c.h.b16 %v491
      %v703 = vunpack.c.l.b16 %v492
      %v704 = vunpack.c.h.b16 %v492
      %v705 = vunpack.c.l.b16 %v493
      %v706 = vunpack.c.h.b16 %v493
      %v707 = vunpack.c.l.b16 %v494
      %v708 = vunpack.c.h.b16 %v494
      %v709 = vunpack.c.l.b16 %v495
      %v710 = vunpack.c.h.b16 %v495
      %v711 = vunpack.c.l.b16 %v496
      %v712 = vunpack.c.h.b16 %v496
      %v713 = vunpack.c.l.b16 %v497
      %v714 = vunpack.c.h.b16 %v497
      %v715 = vunpack.c.l.b16 %v498
      %v716 = vunpack.c.h.b16 %v498
      %v717 = vunpack.c.l.b16 %v499
      %v718 = vunpack.c.h.b16 %v499
      %v719 = vunpack.c.l.b16 %v500
      %v720 = vunpack.c.h.b16 %v500
      %v721 = vunpack.c.l.b16 %v501
      %v722 = vunpack.c.h.b16 %v501
      %v723 = vunpack.c.l.b16 %v502
      %v724 = vunpack.c.h.b16 %v502
      %v725 = vunpack.c.l.b16 %v503
      %v726 = vunpack.c.h.b16 %v503
      %v727 = vunpack.c.l.b16 %v504
      %v728 = vunpack.c.h.b16 %v504
      %v729 = vpack.c.b16 %v603, %v601
      %v730 = vpack.c.b16 %v604, %v602
      %v731 = vpack.c.b16 %v607, %v605
      %v732 = vpack.c.b16 %v608, %v606
      %v733 = vpack.c.b16 %v611, %v609
      %v734 = vpack.c.b16 %v612, %v610
      %v735 = vpack.c.b16 %v615, %v613
      %v736 = vpack.c.b16 %v616, %v614
      %v737 = vpack.c.b16 %v619, %v617
      %v738 = vpack.c.b16 %v620, %v618
      %v739 = vpack.c.b16 %v623, %v621
      %v740 = vpack.c.b16 %v624, %v622
      %v741 = vpack.c.b16 %v627, %v625
      %v742 = vpack.c.b16 %v628, %v626
      %v743 = vpack.c.b16 %v631, %v629
      %v744 = vpack.c.b16 %v632, %v630
      %v745 = vpack.c.b16 %v635, %v633
      %v746 = vpack.c.b16 %v636, %v634
      %v747 = vpack.c.b16 %v639, %v637
      %v748 = vpack.c.b16 %v640, %v638
      %v749 = vpack.c.b16 %v643, %v641
      %v750 = vpack.c.b16 %v644, %v642
      %v751 = vpack.c.b16 %v647, %v645
      %v752 = vpack.c.b16 %v648, %v646
      %v753 = vpack.c.b16 %v651, %v649
      %v754 = vpack.c.b16 %v652, %v650
      %v755 = vpack.c.b16 %v655, %v653
      %v756 = vpack.c.b16 %v656, %v654
      %v757 = vpack.c.b16 %v659, %v657
      %v758 = vpack.c.b16 %v660, %v658
      %v759 = vpack.c.b16 %v663, %v661
      %v760 = vpack.c.b16 %v664, %v662
      %v761 = vpack.c.b16 %v667, %v665
      %v762 = vpack.c.b16 %v668, %v666
      %v763 = vpack.c.b16 %v671, %v669
      %v764 = vpack.c.b16 %v672, %v670
      %v765 = vpack.c.b16 %v675, %v673
      %v766 = vpack.c.b16 %v676, %v674
      %v767 = vpack.c.b16 %v679, %v677
      %v768 = vpack.c.b16 %v680, %v678
      %v769 = vpack.c.b16 %v683, %v681
      %v770 = vpack.c.b16 %v684, %v682
      %v771 = vpack.c.b16 %v687, %v685
      %v772 = vpack.c.b16 %v688, %v686
      %v773 = vpack.c.b16 %v691, %v689
      %v774 = vpack.c.b16 %v692, %v690
      %v775 = vpack.c.b16 %v695, %v693
      %v776 = vpack.c.b16 %v696, %v694
      %v777 = vpack.c.b16 %v699, %v697
      %v778 = vpack.c.b16 %v700, %v698
      %v779 = vpack.c.b16 %v703, %v701
      %v780 = vpack.c.b16 %v704, %v702
      %v781 = vpack.c.b16 %v707, %v705
      %v782 = vpack.c.b16 %v708, %v706
      %v783 = vpack.c.b16 %v711, %v709
      %v784 = vpack.c.b16 %v712, %v710
      %v785 = vpack.c.b16 %v715, %v713
      %v786 = vpack.c.b16 %v716, %v714
      %v787 = vpack.c.b16 %v719, %v717
      %v788 = vpack.c.b16 %v720, %v718
      %v789 = vpack.c.b16 %v723, %v721
      %v790 = vpack.c.b16 %v724, %v722
      %v791 = vpack.c.b16 %v727, %v725
      %v792 = vpack.c.b16 %v728, %v726
      %v889 = vunpack.c.l.b16 %v505
      %v890 = vunpack.c.l.b16 %v506
      %v891 = vunpack.c.l.b16 %v507
      %v892 = vunpack.c.l.b16 %v508
      %v893 = vunpack.c.l.b16 %v509
      %v894 = vunpack.c.l.b16 %v510
      %v895 = vunpack.c.l.b16 %v511
      %v896 = vunpack.c.l.b16 %v512
      %v897 = vunpack.c.l.b16 %v513
      %v898 = vunpack.c.l.b16 %v514
      %v899 = vunpack.c.l.b16 %v515
      %v900 = vunpack.c.l.b16 %v516
      %v901 = vunpack.c.l.b16 %v517
      %v902 = vunpack.c.l.b16 %v518
      %v903 = vunpack.c.l.b16 %v519
      %v904 = vunpack.c.l.b16 %v520
      %v905 = vunpack.c.l.b16 %v521
      %v906 = vunpack.c.l.b16 %v522
      %v907 = vunpack.c.l.b16 %v523
      %v908 = vunpack.c.l.b16 %v524
      %v909 = vunpack.c.l.b16 %v525
      %v910 = vunpack.c.l.b16 %v526
      %v911 = vunpack.c.l.b16 %v527
      %v912 = vunpack.c.l.b16 %v528
      %v913 = vunpack.c.l.b16 %v529
      %v914 = vunpack.c.l.b16 %v530
      %v915 = vunpack.c.l.b16 %v531
      %v916 = vunpack.c.l.b16 %v532
      %v917 = vunpack.c.l.b16 %v533
      %v918 = vunpack.c.l.b16 %v534
      %v919 = vunpack.c.l.b16 %v535
      %v920 = vunpack.c.l.b16 %v536
      %v921 = vpack.c.b16 %v890, %v889
      %v922 = vpack.c.b16 %v892, %v891
      %v923 = vpack.c.b16 %v894, %v893
      %v924 = vpack.c.b16 %v896, %v895
      %v925 = vpack.c.b16 %v898, %v897
      %v926 = vpack.c.b16 %v900, %v899
      %v927 = vpack.c.b16 %v902, %v901
      %v928 = vpack.c.b16 %v904, %v903
      %v929 = vpack.c.b16 %v906, %v905
      %v930 = vpack.c.b16 %v908, %v907
      %v931 = vpack.c.b16 %v910, %v909
      %v932 = vpack.c.b16 %v912, %v911
      %v933 = vpack.c.b16 %v914, %v913
      %v934 = vpack.c.b16 %v916, %v915
      %v935 = vpack.c.b16 %v918, %v917
      %v936 = vpack.c.b16 %v920, %v919
      %953 = vmatprep.subr.bf16.mxu0 0
      %954 = vmatpush1.bf16.msra.mxu0 %v928
      %955 = vmatprep.subr.bf16.mxu0 0
      %956 = vmatpush1.bf16.msra.mxu0 %v927
      %957 = vmatprep.subr.bf16.mxu0 0
      %958 = vmatpush1.bf16.msra.mxu0 %v926
      %959 = vmatprep.subr.bf16.mxu0 0
      %960 = vmatpush1.bf16.msra.mxu0 %v925
      %961 = vmatprep.subr.bf16.mxu0 0
      %962 = vmatpush1.bf16.msra.mxu0 %v924
      %963 = vmatprep.subr.bf16.mxu0 0
      %964 = vmatpush1.bf16.msra.mxu0 %v923
      %965 = vmatprep.subr.bf16.mxu0 0
      %966 = vmatpush1.bf16.msra.mxu0 %v922
      %967 = vmatprep.subr.bf16.mxu0 0
      %968 = vmatpush1.bf16.msra.mxu0 %v921
      %969 = vmatprep.subr.bf16.mxu0 0
      %970 = vmatpush2.bf16.msra.mxu0 %v936
      %971 = vmatprep.subr.bf16.mxu0 0
      %972 = vmatpush2.bf16.msra.mxu0 %v935
      %973 = vmatprep.subr.bf16.mxu0 0
      %974 = vmatpush2.bf16.msra.mxu0 %v934
      %975 = vmatprep.subr.bf16.mxu0 0
      %976 = vmatpush2.bf16.msra.mxu0 %v933
      %977 = vmatprep.subr.bf16.mxu0 0
      %978 = vmatpush2.bf16.msra.mxu0 %v932
      %979 = vmatprep.subr.bf16.mxu0 0
      %980 = vmatpush2.bf16.msra.mxu0 %v931
      %981 = vmatprep.subr.bf16.mxu0 0
      %982 = vmatpush2.bf16.msra.mxu0 %v930
      %983 = vmatprep.subr.bf16.mxu0 0
      %984 = vmatpush2.bf16.msra.mxu0 %v929
      %985 = vmatprep.mubr.bf16.mxu0 %v730
      %986 = vmatmul.mubr.bf16.gmra.mxu0 %v729
      %v987 = vpop.f32.mrf.mxu0
      %v988 = vadd.f32 0.0, %v987
      %v989 = vpop.f32.mrf.mxu0
      %v990 = vpop.f32.mrf.mxu0
      %v991 = vadd.f32 0.0, %v990
      %v992 = vpop.f32.mrf.mxu0
      %993 = vmatprep.mubr.bf16.mxu0 %v732
      %994 = vmatmul.mubr.bf16.gmra.mxu0 %v731
      %v995 = vpop.f32.mrf.mxu0
      %v996 = vadd.f32 0.0, %v995
      %v997 = vpop.f32.mrf.mxu0
      %v998 = vpop.f32.mrf.mxu0
      %v999 = vadd.f32 0.0, %v998
      %v1000 = vpop.f32.mrf.mxu0
      %1001 = vmatprep.mubr.bf16.mxu0 %v734
      %1002 = vmatmul.mubr.bf16.gmra.mxu0 %v733
      %v1003 = vpop.f32.mrf.mxu0
      %v1004 = vadd.f32 0.0, %v1003
      %v1005 = vpop.f32.mrf.mxu0
      %v1006 = vpop.f32.mrf.mxu0
      %v1007 = vadd.f32 0.0, %v1006
      %v1008 = vpop.f32.mrf.mxu0
      %1009 = vmatprep.mubr.bf16.mxu0 %v736
      %1010 = vmatmul.mubr.bf16.gmra.mxu0 %v735
      %v1011 = vpop.f32.mrf.mxu0
      %v1012 = vadd.f32 0.0, %v1011
      %v1013 = vpop.f32.mrf.mxu0
      %v1014 = vpop.f32.mrf.mxu0
      %v1015 = vadd.f32 0.0, %v1014
      %v1016 = vpop.f32.mrf.mxu0
      %1017 = vmatprep.mubr.bf16.mxu0 %v738
      %1018 = vmatmul.mubr.bf16.gmra.mxu0 %v737
      %v1019 = vpop.f32.mrf.mxu0
      %v1020 = vadd.f32 0.0, %v1019
      %v1021 = vpop.f32.mrf.mxu0
      %v1022 = vpop.f32.mrf.mxu0
      %v1023 = vadd.f32 0.0, %v1022
      %v1024 = vpop.f32.mrf.mxu0
      %1025 = vmatprep.mubr.bf16.mxu0 %v740
      %1026 = vmatmul.mubr.bf16.gmra.mxu0 %v739
      %v1027 = vpop.f32.mrf.mxu0
      %v1028 = vadd.f32 0.0, %v1027
      %v1029 = vpop.f32.mrf.mxu0
      %v1030 = vpop.f32.mrf.mxu0
      %v1031 = vadd.f32 0.0, %v1030
      %v1032 = vpop.f32.mrf.mxu0
      %1033 = vmatprep.mubr.bf16.mxu0 %v742
      %1034 = vmatmul.mubr.bf16.gmra.mxu0 %v741
      %v1035 = vpop.f32.mrf.mxu0
      %v1036 = vadd.f32 0.0, %v1035
      %v1037 = vpop.f32.mrf.mxu0
      %v1038 = vpop.f32.mrf.mxu0
      %v1039 = vadd.f32 0.0, %v1038
      %v1040 = vpop.f32.mrf.mxu0
      %1041 = vmatprep.mubr.bf16.mxu0 %v744
      %1042 = vmatmul.mubr.bf16.gmra.mxu0 %v743
      %v1043 = vpop.f32.mrf.mxu0
      %v1044 = vadd.f32 0.0, %v1043
      %v1045 = vpop.f32.mrf.mxu0
      %v1046 = vpop.f32.mrf.mxu0
      %v1047 = vadd.f32 0.0, %v1046
      %v1048 = vpop.f32.mrf.mxu0
      %1049 = vmatprep.mubr.bf16.mxu0 %v746
      %1050 = vmatmul.mubr.bf16.gmra.mxu0 %v745
      %v1051 = vpop.f32.mrf.mxu0
      %v1052 = vadd.f32 0.0, %v1051
      %v1053 = vpop.f32.mrf.mxu0
      %v1054 = vpop.f32.mrf.mxu0
      %v1055 = vadd.f32 0.0, %v1054
      %v1056 = vpop.f32.mrf.mxu0
      %1057 = vmatprep.mubr.bf16.mxu0 %v748
      %1058 = vmatmul.mubr.bf16.gmra.mxu0 %v747
      %v1059 = vpop.f32.mrf.mxu0
      %v1060 = vadd.f32 0.0, %v1059
      %v1061 = vpop.f32.mrf.mxu0
      %v1062 = vpop.f32.mrf.mxu0
      %v1063 = vadd.f32 0.0, %v1062
      %v1064 = vpop.f32.mrf.mxu0
      %1065 = vmatprep.mubr.bf16.mxu0 %v750
      %1066 = vmatmul.mubr.bf16.gmra.mxu0 %v749
      %v1067 = vpop.f32.mrf.mxu0
      %v1068 = vadd.f32 0.0, %v1067
      %v1069 = vpop.f32.mrf.mxu0
      %v1070 = vpop.f32.mrf.mxu0
      %v1071 = vadd.f32 0.0, %v1070
      %v1072 = vpop.f32.mrf.mxu0
      %1073 = vmatprep.mubr.bf16.mxu0 %v752
      %1074 = vmatmul.mubr.bf16.gmra.mxu0 %v751
      %v1075 = vpop.f32.mrf.mxu0
      %v1076 = vadd.f32 0.0, %v1075
      %v1077 = vpop.f32.mrf.mxu0
      %v1078 = vpop.f32.mrf.mxu0
      %v1079 = vadd.f32 0.0, %v1078
      %v1080 = vpop.f32.mrf.mxu0
      %1081 = vmatprep.mubr.bf16.mxu0 %v754
      %1082 = vmatmul.mubr.bf16.gmra.mxu0 %v753
      %v1083 = vpop.f32.mrf.mxu0
      %v1084 = vadd.f32 0.0, %v1083
      %v1085 = vpop.f32.mrf.mxu0
      %v1086 = vpop.f32.mrf.mxu0
      %v1087 = vadd.f32 0.0, %v1086
      %v1088 = vpop.f32.mrf.mxu0
      %1089 = vmatprep.mubr.bf16.mxu0 %v756
      %1090 = vmatmul.mubr.bf16.gmra.mxu0 %v755
      %v1091 = vpop.f32.mrf.mxu0
      %v1092 = vadd.f32 0.0, %v1091
      %v1093 = vpop.f32.mrf.mxu0
      %v1094 = vpop.f32.mrf.mxu0
      %v1095 = vadd.f32 0.0, %v1094
      %v1096 = vpop.f32.mrf.mxu0
      %1097 = vmatprep.mubr.bf16.mxu0 %v758
      %1098 = vmatmul.mubr.bf16.gmra.mxu0 %v757
      %v1099 = vpop.f32.mrf.mxu0
      %v1100 = vadd.f32 0.0, %v1099
      %v1101 = vpop.f32.mrf.mxu0
      %v1102 = vpop.f32.mrf.mxu0
      %v1103 = vadd.f32 0.0, %v1102
      %v1104 = vpop.f32.mrf.mxu0
      %1105 = vmatprep.mubr.bf16.mxu0 %v760
      %1106 = vmatmul.mubr.bf16.gmra.mxu0 %v759
      %v1107 = vpop.f32.mrf.mxu0
      %v1108 = vadd.f32 0.0, %v1107
      %v1109 = vpop.f32.mrf.mxu0
      %v1110 = vpop.f32.mrf.mxu0
      %v1111 = vadd.f32 0.0, %v1110
      %v1112 = vpop.f32.mrf.mxu0
      %1113 = vmatprep.mubr.bf16.mxu0 %v762
      %1114 = vmatmul.mubr.bf16.gmra.mxu0 %v761
      %v1115 = vpop.f32.mrf.mxu0
      %v1116 = vadd.f32 0.0, %v1115
      %v1117 = vpop.f32.mrf.mxu0
      %v1118 = vpop.f32.mrf.mxu0
      %v1119 = vadd.f32 0.0, %v1118
      %v1120 = vpop.f32.mrf.mxu0
      %1121 = vmatprep.mubr.bf16.mxu0 %v764
      %1122 = vmatmul.mubr.bf16.gmra.mxu0 %v763
      %v1123 = vpop.f32.mrf.mxu0
      %v1124 = vadd.f32 0.0, %v1123
      %v1125 = vpop.f32.mrf.mxu0
      %v1126 = vpop.f32.mrf.mxu0
      %v1127 = vadd.f32 0.0, %v1126
      %v1128 = vpop.f32.mrf.mxu0
      %1129 = vmatprep.mubr.bf16.mxu0 %v766
      %1130 = vmatmul.mubr.bf16.gmra.mxu0 %v765
      %v1131 = vpop.f32.mrf.mxu0
      %v1132 = vadd.f32 0.0, %v1131
      %v1133 = vpop.f32.mrf.mxu0
      %v1134 = vpop.f32.mrf.mxu0
      %v1135 = vadd.f32 0.0, %v1134
      %v1136 = vpop.f32.mrf.mxu0
      %1137 = vmatprep.mubr.bf16.mxu0 %v768
      %1138 = vmatmul.mubr.bf16.gmra.mxu0 %v767
      %v1139 = vpop.f32.mrf.mxu0
      %v1140 = vadd.f32 0.0, %v1139
      %v1141 = vpop.f32.mrf.mxu0
      %v1142 = vpop.f32.mrf.mxu0
      %v1143 = vadd.f32 0.0, %v1142
      %v1144 = vpop.f32.mrf.mxu0
      %1145 = vmatprep.mubr.bf16.mxu0 %v770
      %1146 = vmatmul.mubr.bf16.gmra.mxu0 %v769
      %v1147 = vpop.f32.mrf.mxu0
      %v1148 = vadd.f32 0.0, %v1147
      %v1149 = vpop.f32.mrf.mxu0
      %v1150 = vpop.f32.mrf.mxu0
      %v1151 = vadd.f32 0.0, %v1150
      %v1152 = vpop.f32.mrf.mxu0
      %1153 = vmatprep.mubr.bf16.mxu0 %v772
      %1154 = vmatmul.mubr.bf16.gmra.mxu0 %v771
      %v1155 = vpop.f32.mrf.mxu0
      %v1156 = vadd.f32 0.0, %v1155
      %v1157 = vpop.f32.mrf.mxu0
      %v1158 = vpop.f32.mrf.mxu0
      %v1159 = vadd.f32 0.0, %v1158
      %v1160 = vpop.f32.mrf.mxu0
      %1161 = vmatprep.mubr.bf16.mxu0 %v774
      %1162 = vmatmul.mubr.bf16.gmra.mxu0 %v773
      %v1163 = vpop.f32.mrf.mxu0
      %v1164 = vadd.f32 0.0, %v1163
      %v1165 = vpop.f32.mrf.mxu0
      %v1166 = vpop.f32.mrf.mxu0
      %v1167 = vadd.f32 0.0, %v1166
      %v1168 = vpop.f32.mrf.mxu0
      %1169 = vmatprep.mubr.bf16.mxu0 %v776
      %1170 = vmatmul.mubr.bf16.gmra.mxu0 %v775
      %v1171 = vpop.f32.mrf.mxu0
      %v1172 = vadd.f32 0.0, %v1171
      %v1173 = vpop.f32.mrf.mxu0
      %v1174 = vpop.f32.mrf.mxu0
      %v1175 = vadd.f32 0.0, %v1174
      %v1176 = vpop.f32.mrf.mxu0
      %1177 = vmatprep.mubr.bf16.mxu0 %v778
      %1178 = vmatmul.mubr.bf16.gmra.mxu0 %v777
      %v1179 = vpop.f32.mrf.mxu0
      %v1180 = vadd.f32 0.0, %v1179
      %v1181 = vpop.f32.mrf.mxu0
      %v1182 = vpop.f32.mrf.mxu0
      %v1183 = vadd.f32 0.0, %v1182
      %v1184 = vpop.f32.mrf.mxu0
      %1185 = vmatprep.mubr.bf16.mxu0 %v780
      %1186 = vmatmul.mubr.bf16.gmra.mxu0 %v779
      %v1187 = vpop.f32.mrf.mxu0
      %v1188 = vadd.f32 0.0, %v1187
      %v1189 = vpop.f32.mrf.mxu0
      %v1190 = vpop.f32.mrf.mxu0
      %v1191 = vadd.f32 0.0, %v1190
      %v1192 = vpop.f32.mrf.mxu0
      %1193 = vmatprep.mubr.bf16.mxu0 %v782
      %1194 = vmatmul.mubr.bf16.gmra.mxu0 %v781
      %v1195 = vpop.f32.mrf.mxu0
      %v1196 = vadd.f32 0.0, %v1195
      %v1197 = vpop.f32.mrf.mxu0
      %v1198 = vpop.f32.mrf.mxu0
      %v1199 = vadd.f32 0.0, %v1198
      %v1200 = vpop.f32.mrf.mxu0
      %1201 = vmatprep.mubr.bf16.mxu0 %v784
      %1202 = vmatmul.mubr.bf16.gmra.mxu0 %v783
      %v1203 = vpop.f32.mrf.mxu0
      %v1204 = vadd.f32 0.0, %v1203
      %v1205 = vpop.f32.mrf.mxu0
      %v1206 = vpop.f32.mrf.mxu0
      %v1207 = vadd.f32 0.0, %v1206
      %v1208 = vpop.f32.mrf.mxu0
      %1209 = vmatprep.mubr.bf16.mxu0 %v786
      %1210 = vmatmul.mubr.bf16.gmra.mxu0 %v785
      %v1211 = vpop.f32.mrf.mxu0
      %v1212 = vadd.f32 0.0, %v1211
      %v1213 = vpop.f32.mrf.mxu0
      %v1214 = vpop.f32.mrf.mxu0
      %v1215 = vadd.f32 0.0, %v1214
      %v1216 = vpop.f32.mrf.mxu0
      %1217 = vmatprep.mubr.bf16.mxu0 %v788
      %1218 = vmatmul.mubr.bf16.gmra.mxu0 %v787
      %v1219 = vpop.f32.mrf.mxu0
      %v1220 = vadd.f32 0.0, %v1219
      %v1221 = vpop.f32.mrf.mxu0
      %v1222 = vpop.f32.mrf.mxu0
      %v1223 = vadd.f32 0.0, %v1222
      %v1224 = vpop.f32.mrf.mxu0
      %1225 = vmatprep.mubr.bf16.mxu0 %v790
      %1226 = vmatmul.mubr.bf16.gmra.mxu0 %v789
      %v1227 = vpop.f32.mrf.mxu0
      %v1228 = vadd.f32 0.0, %v1227
      %v1229 = vpop.f32.mrf.mxu0
      %v1230 = vpop.f32.mrf.mxu0
      %v1231 = vadd.f32 0.0, %v1230
      %v1232 = vpop.f32.mrf.mxu0
      %1233 = vmatprep.mubr.bf16.mxu0 %v792
      %1234 = vmatmul.mubr.bf16.gmra.mxu0 %v791
      %v1235 = vpop.f32.mrf.mxu0
      %v1236 = vadd.f32 0.0, %v1235
      %v1237 = vpop.f32.mrf.mxu0
      %v1238 = vpop.f32.mrf.mxu0
      %v1239 = vadd.f32 0.0, %v1238
      %v1240 = vpop.f32.mrf.mxu0
      %1241 = vdwg.mxu0
      %v1242 = vadd.f32 %v377, %v988
      %v1243 = vadd.f32 %v378, %v991
      %v1244 = vadd.f32 %v379, %v996
      %v1245 = vadd.f32 %v380, %v999
      %v1246 = vadd.f32 %v381, %v1004
      %v1247 = vadd.f32 %v382, %v1007
      %v1248 = vadd.f32 %v383, %v1012
      %v1249 = vadd.f32 %v384, %v1015
      %v1250 = vadd.f32 %v385, %v1020
      %v1251 = vadd.f32 %v386, %v1023
      %v1252 = vadd.f32 %v387, %v1028
      %v1253 = vadd.f32 %v388, %v1031
      %v1254 = vadd.f32 %v389, %v1036
      %v1255 = vadd.f32 %v390, %v1039
      %v1256 = vadd.f32 %v391, %v1044
      %v1257 = vadd.f32 %v392, %v1047
      %v1258 = vadd.f32 %v393, %v1052
      %v1259 = vadd.f32 %v394, %v1055
      %v1260 = vadd.f32 %v395, %v1060
      %v1261 = vadd.f32 %v396, %v1063
      %v1262 = vadd.f32 %v397, %v1068
      %v1263 = vadd.f32 %v398, %v1071
      %v1264 = vadd.f32 %v399, %v1076
      %v1265 = vadd.f32 %v400, %v1079
      %v1266 = vadd.f32 %v401, %v1084
      %v1267 = vadd.f32 %v402, %v1087
      %v1268 = vadd.f32 %v403, %v1092
      %v1269 = vadd.f32 %v404, %v1095
      %v1270 = vadd.f32 %v405, %v1100
      %v1271 = vadd.f32 %v406, %v1103
      %v1272 = vadd.f32 %v407, %v1108
      %v1273 = vadd.f32 %v408, %v1111
      %v1274 = vadd.f32 %v409, %v1116
      %v1275 = vadd.f32 %v410, %v1119
      %v1276 = vadd.f32 %v411, %v1124
      %v1277 = vadd.f32 %v412, %v1127
      %v1278 = vadd.f32 %v413, %v1132
      %v1279 = vadd.f32 %v414, %v1135
      %v1280 = vadd.f32 %v415, %v1140
      %v1281 = vadd.f32 %v416, %v1143
      %v1282 = vadd.f32 %v417, %v1148
      %v1283 = vadd.f32 %v418, %v1151
      %v1284 = vadd.f32 %v419, %v1156
      %v1285 = vadd.f32 %v420, %v1159
      %v1286 = vadd.f32 %v421, %v1164
      %v1287 = vadd.f32 %v422, %v1167
      %v1288 = vadd.f32 %v423, %v1172
      %v1289 = vadd.f32 %v424, %v1175
      %v1290 = vadd.f32 %v425, %v1180
      %v1291 = vadd.f32 %v426, %v1183
      %v1292 = vadd.f32 %v427, %v1188
      %v1293 = vadd.f32 %v428, %v1191
      %v1294 = vadd.f32 %v429, %v1196
      %v1295 = vadd.f32 %v430, %v1199
      %v1296 = vadd.f32 %v431, %v1204
      %v1297 = vadd.f32 %v432, %v1207
      %v1298 = vadd.f32 %v433, %v1212
      %v1299 = vadd.f32 %v434, %v1215
      %v1300 = vadd.f32 %v435, %v1220
      %v1301 = vadd.f32 %v436, %v1223
      %v1302 = vadd.f32 %v437, %v1228
      %v1303 = vadd.f32 %v438, %v1231
      %v1304 = vadd.f32 %v439, %v1236
      %v1305 = vadd.f32 %v440, %v1239
      %1306 = vst [vmem:[#allocation2] sm:$0xff] %v1242
      %1307 = vst [vmem:[#allocation2 + $0x8] sm:$0xff] %v1243
      %1308 = vst [vmem:[#allocation2 + $0x10] sm:$0xff] %v1244
      %1309 = vst [vmem:[#allocation2 + $0x18] sm:$0xff] %v1245
      %1310 = vst [vmem:[#allocation2 + $0x20] sm:$0xff] %v1246
      %1311 = vst [vmem:[#allocation2 + $0x28] sm:$0xff] %v1247
      %1312 = vst [vmem:[#allocation2 + $0x30] sm:$0xff] %v1248
      %1313 = vst [vmem:[#allocation2 + $0x38] sm:$0xff] %v1249
      %1314 = vst [vmem:[#allocation2 + $0x40] sm:$0xff] %v1250
      %1315 = vst [vmem:[#allocation2 + $0x48] sm:$0xff] %v1251
      %1316 = vst [vmem:[#allocation2 + $0x50] sm:$0xff] %v1252
      %1317 = vst [vmem:[#allocation2 + $0x58] sm:$0xff] %v1253
      %1318 = vst [vmem:[#allocation2 + $0x60] sm:$0xff] %v1254
      %1319 = vst [vmem:[#allocation2 + $0x68] sm:$0xff] %v1255
      %1320 = vst [vmem:[#allocation2 + $0x70] sm:$0xff] %v1256
      %1321 = vst [vmem:[#allocation2 + $0x78] sm:$0xff] %v1257
      %1322 = vst [vmem:[#allocation2 + $0x80] sm:$0xff] %v1258
      %1323 = vst [vmem:[#allocation2 + $0x88] sm:$0xff] %v1259
      %1324 = vst [vmem:[#allocation2 + $0x90] sm:$0xff] %v1260
      %1325 = vst [vmem:[#allocation2 + $0x98] sm:$0xff] %v1261
      %1326 = vst [vmem:[#allocation2 + $0xa0] sm:$0xff] %v1262
      %1327 = vst [vmem:[#allocation2 + $0xa8] sm:$0xff] %v1263
      %1328 = vst [vmem:[#allocation2 + $0xb0] sm:$0xff] %v1264
      %1329 = vst [vmem:[#allocation2 + $0xb8] sm:$0xff] %v1265
      %1330 = vst [vmem:[#allocation2 + $0xc0] sm:$0xff] %v1266
      %1331 = vst [vmem:[#allocation2 + $0xc8] sm:$0xff] %v1267
      %1332 = vst [vmem:[#allocation2 + $0xd0] sm:$0xff] %v1268
      %1333 = vst [vmem:[#allocation2 + $0xd8] sm:$0xff] %v1269
      %1334 = vst [vmem:[#allocation2 + $0xe0] sm:$0xff] %v1270
      %1335 = vst [vmem:[#allocation2 + $0xe8] sm:$0xff] %v1271
      %1336 = vst [vmem:[#allocation2 + $0xf0] sm:$0xff] %v1272
      %1337 = vst [vmem:[#allocation2 + $0xf8] sm:$0xff] %v1273
      %1338 = vst [vmem:[#allocation2 + $0x100] sm:$0xff] %v1274
      %1339 = vst [vmem:[#allocation2 + $0x108] sm:$0xff] %v1275
      %1340 = vst [vmem:[#allocation2 + $0x110] sm:$0xff] %v1276
      %1341 = vst [vmem:[#allocation2 + $0x118] sm:$0xff] %v1277
      %1342 = vst [vmem:[#allocation2 + $0x120] sm:$0xff] %v1278
      %1343 = vst [vmem:[#allocation2 + $0x128] sm:$0xff] %v1279
      %1344 = vst [vmem:[#allocation2 + $0x130] sm:$0xff] %v1280
      %1345 = vst [vmem:[#allocation2 + $0x138] sm:$0xff] %v1281
      %1346 = vst [vmem:[#allocation2 + $0x140] sm:$0xff] %v1282
      %1347 = vst [vmem:[#allocation2 + $0x148] sm:$0xff] %v1283
      %1348 = vst [vmem:[#allocation2 + $0x150] sm:$0xff] %v1284
      %1349 = vst [vmem:[#allocation2 + $0x158] sm:$0xff] %v1285
      %1350 = vst [vmem:[#allocation2 + $0x160] sm:$0xff] %v1286
      %1351 = vst [vmem:[#allocation2 + $0x168] sm:$0xff] %v1287
      %1352 = vst [vmem:[#allocation2 + $0x170] sm:$0xff] %v1288
      %1353 = vst [vmem:[#allocation2 + $0x178] sm:$0xff] %v1289
      %1354 = vst [vmem:[#allocation2 + $0x180] sm:$0xff] %v1290
      %1355 = vst [vmem:[#allocation2 + $0x188] sm:$0xff] %v1291
      %1356 = vst [vmem:[#allocation2 + $0x190] sm:$0xff] %v1292
      %1357 = vst [vmem:[#allocation2 + $0x198] sm:$0xff] %v1293
      %1358 = vst [vmem:[#allocation2 + $0x1a0] sm:$0xff] %v1294
      %1359 = vst [vmem:[#allocation2 + $0x1a8] sm:$0xff] %v1295
      %1360 = vst [vmem:[#allocation2 + $0x1b0] sm:$0xff] %v1296
      %1361 = vst [vmem:[#allocation2 + $0x1b8] sm:$0xff] %v1297
      %1362 = vst [vmem:[#allocation2 + $0x1c0] sm:$0xff] %v1298
      %1363 = vst [vmem:[#allocation2 + $0x1c8] sm:$0xff] %v1299
      %1364 = vst [vmem:[#allocation2 + $0x1d0] sm:$0xff] %v1300
      %1365 = vst [vmem:[#allocation2 + $0x1d8] sm:$0xff] %v1301
      %1366 = vst [vmem:[#allocation2 + $0x1e0] sm:$0xff] %v1302
      %1367 = vst [vmem:[#allocation2 + $0x1e8] sm:$0xff] %v1303
      %1368 = vst [vmem:[#allocation2 + $0x1f0] sm:$0xff] %v1304
      %1369 = vst [vmem:[#allocation2 + $0x1f8] sm:$0xff] %v1305
      // Predicated region
      $region41: #{matmul_bn_act.1} parent=35 // pred_check
        %p1370 = pneg %p309
      $region42: #{matmul_bn_act.1} parent=35 // pred_check_branch
        %1372 = sbr.rel (%p1370) target = $region44
      $region43: #{matmul_bn_act.1} parent=35 // pred_region
        %v1373 = vld [vmem:[#allocation2] sm:$0xff]
        %v1374 = vld [vmem:[#allocation2 + $0x8] sm:$0xff]
        %v1375 = vld [vmem:[#allocation2 + $0x10] sm:$0xff]
        %v1376 = vld [vmem:[#allocation2 + $0x18] sm:$0xff]
        %v1377 = vld [vmem:[#allocation2 + $0x20] sm:$0xff]
        %v1378 = vld [vmem:[#allocation2 + $0x28] sm:$0xff]
        %v1379 = vld [vmem:[#allocation2 + $0x30] sm:$0xff]
        %v1380 = vld [vmem:[#allocation2 + $0x38] sm:$0xff]
        %v1381 = vld [vmem:[#allocation2 + $0x40] sm:$0xff]
        %v1382 = vld [vmem:[#allocation2 + $0x48] sm:$0xff]
        %v1383 = vld [vmem:[#allocation2 + $0x50] sm:$0xff]
        %v1384 = vld [vmem:[#allocation2 + $0x58] sm:$0xff]
        %v1385 = vld [vmem:[#allocation2 + $0x60] sm:$0xff]
        %v1386 = vld [vmem:[#allocation2 + $0x68] sm:$0xff]
        %v1387 = vld [vmem:[#allocation2 + $0x70] sm:$0xff]
        %v1388 = vld [vmem:[#allocation2 + $0x78] sm:$0xff]
        %v1389 = vld [vmem:[#allocation2 + $0x80] sm:$0xff]
        %v1390 = vld [vmem:[#allocation2 + $0x88] sm:$0xff]
        %v1391 = vld [vmem:[#allocation2 + $0x90] sm:$0xff]
        %v1392 = vld [vmem:[#allocation2 + $0x98] sm:$0xff]
        %v1393 = vld [vmem:[#allocation2 + $0xa0] sm:$0xff]
        %v1394 = vld [vmem:[#allocation2 + $0xa8] sm:$0xff]
        %v1395 = vld [vmem:[#allocation2 + $0xb0] sm:$0xff]
        %v1396 = vld [vmem:[#allocation2 + $0xb8] sm:$0xff]
        %v1397 = vld [vmem:[#allocation2 + $0xc0] sm:$0xff]
        %v1398 = vld [vmem:[#allocation2 + $0xc8] sm:$0xff]
        %v1399 = vld [vmem:[#allocation2 + $0xd0] sm:$0xff]
        %v1400 = vld [vmem:[#allocation2 + $0xd8] sm:$0xff]
        %v1401 = vld [vmem:[#allocation2 + $0xe0] sm:$0xff]
        %v1402 = vld [vmem:[#allocation2 + $0xe8] sm:$0xff]
        %v1403 = vld [vmem:[#allocation2 + $0xf0] sm:$0xff]
        %v1404 = vld [vmem:[#allocation2 + $0xf8] sm:$0xff]
        %v1405 = vld [vmem:[#allocation2 + $0x100] sm:$0xff]
        %v1406 = vld [vmem:[#allocation2 + $0x108] sm:$0xff]
        %v1407 = vld [vmem:[#allocation2 + $0x110] sm:$0xff]
        %v1408 = vld [vmem:[#allocation2 + $0x118] sm:$0xff]
        %v1409 = vld [vmem:[#allocation2 + $0x120] sm:$0xff]
        %v1410 = vld [vmem:[#allocation2 + $0x128] sm:$0xff]
        %v1411 = vld [vmem:[#allocation2 + $0x130] sm:$0xff]
        %v1412 = vld [vmem:[#allocation2 + $0x138] sm:$0xff]
        %v1413 = vld [vmem:[#allocation2 + $0x140] sm:$0xff]
        %v1414 = vld [vmem:[#allocation2 + $0x148] sm:$0xff]
        %v1415 = vld [vmem:[#allocation2 + $0x150] sm:$0xff]
        %v1416 = vld [vmem:[#allocation2 + $0x158] sm:$0xff]
        %v1417 = vld [vmem:[#allocation2 + $0x160] sm:$0xff]
        %v1418 = vld [vmem:[#allocation2 + $0x168] sm:$0xff]
        %v1419 = vld [vmem:[#allocation2 + $0x170] sm:$0xff]
        %v1420 = vld [vmem:[#allocation2 + $0x178] sm:$0xff]
        %v1421 = vld [vmem:[#allocation2 + $0x180] sm:$0xff]
        %v1422 = vld [vmem:[#allocation2 + $0x188] sm:$0xff]
        %v1423 = vld [vmem:[#allocation2 + $0x190] sm:$0xff]
        %v1424 = vld [vmem:[#allocation2 + $0x198] sm:$0xff]
        %v1425 = vld [vmem:[#allocation2 + $0x1a0] sm:$0xff]
        %v1426 = vld [vmem:[#allocation2 + $0x1a8] sm:$0xff]
        %v1427 = vld [vmem:[#allocation2 + $0x1b0] sm:$0xff]
        %v1428 = vld [vmem:[#allocation2 + $0x1b8] sm:$0xff]
        %v1429 = vld [vmem:[#allocation2 + $0x1c0] sm:$0xff]
        %v1430 = vld [vmem:[#allocation2 + $0x1c8] sm:$0xff]
        %v1431 = vld [vmem:[#allocation2 + $0x1d0] sm:$0xff]
        %v1432 = vld [vmem:[#allocation2 + $0x1d8] sm:$0xff]
        %v1433 = vld [vmem:[#allocation2 + $0x1e0] sm:$0xff]
        %v1434 = vld [vmem:[#allocation2 + $0x1e8] sm:$0xff]
        %v1435 = vld [vmem:[#allocation2 + $0x1f0] sm:$0xff]
        %v1436 = vld [vmem:[#allocation2 + $0x1f8] sm:$0xff]
        %v1437 = vld [vmem:[%s295] sm:$0x1]
        %v1439 = vlaneseq
        %v1440 = vshrl.u32 %v1439, 7
        %v1441 = vsub.s32 0, %v1440
        %v1442 = vrot.slane %v1437, %v1441
        %v1444 = vmul.f32 %v1373, %v1442
        %v1445 = vmul.f32 %v1374, %v1442
        %v1446 = vmul.f32 %v1375, %v1442
        %v1447 = vmul.f32 %v1376, %v1442
        %v1448 = vmul.f32 %v1377, %v1442
        %v1449 = vmul.f32 %v1378, %v1442
        %v1450 = vmul.f32 %v1379, %v1442
        %v1451 = vmul.f32 %v1380, %v1442
        %v1452 = vmul.f32 %v1381, %v1442
        %v1453 = vmul.f32 %v1382, %v1442
        %v1454 = vmul.f32 %v1383, %v1442
        %v1455 = vmul.f32 %v1384, %v1442
        %v1456 = vmul.f32 %v1385, %v1442
        %v1457 = vmul.f32 %v1386, %v1442
        %v1458 = vmul.f32 %v1387, %v1442
        %v1459 = vmul.f32 %v1388, %v1442
        %v1460 = vmul.f32 %v1389, %v1442
        %v1461 = vmul.f32 %v1390, %v1442
        %v1462 = vmul.f32 %v1391, %v1442
        %v1463 = vmul.f32 %v1392, %v1442
        %v1464 = vmul.f32 %v1393, %v1442
        %v1465 = vmul.f32 %v1394, %v1442
        %v1466 = vmul.f32 %v1395, %v1442
        %v1467 = vmul.f32 %v1396, %v1442
        %v1468 = vmul.f32 %v1397, %v1442
        %v1469 = vmul.f32 %v1398, %v1442
        %v1470 = vmul.f32 %v1399, %v1442
        %v1471 = vmul.f32 %v1400, %v1442
        %v1472 = vmul.f32 %v1401, %v1442
        %v1473 = vmul.f32 %v1402, %v1442
        %v1474 = vmul.f32 %v1403, %v1442
        %v1475 = vmul.f32 %v1404, %v1442
        %v1476 = vmul.f32 %v1405, %v1442
        %v1477 = vmul.f32 %v1406, %v1442
        %v1478 = vmul.f32 %v1407, %v1442
        %v1479 = vmul.f32 %v1408, %v1442
        %v1480 = vmul.f32 %v1409, %v1442
        %v1481 = vmul.f32 %v1410, %v1442
        %v1482 = vmul.f32 %v1411, %v1442
        %v1483 = vmul.f32 %v1412, %v1442
        %v1484 = vmul.f32 %v1413, %v1442
        %v1485 = vmul.f32 %v1414, %v1442
        %v1486 = vmul.f32 %v1415, %v1442
        %v1487 = vmul.f32 %v1416, %v1442
        %v1488 = vmul.f32 %v1417, %v1442
        %v1489 = vmul.f32 %v1418, %v1442
        %v1490 = vmul.f32 %v1419, %v1442
        %v1491 = vmul.f32 %v1420, %v1442
        %v1492 = vmul.f32 %v1421, %v1442
        %v1493 = vmul.f32 %v1422, %v1442
        %v1494 = vmul.f32 %v1423, %v1442
        %v1495 = vmul.f32 %v1424, %v1442
        %v1496 = vmul.f32 %v1425, %v1442
        %v1497 = vmul.f32 %v1426, %v1442
        %v1498 = vmul.f32 %v1427, %v1442
        %v1499 = vmul.f32 %v1428, %v1442
        %v1500 = vmul.f32 %v1429, %v1442
        %v1501 = vmul.f32 %v1430, %v1442
        %v1502 = vmul.f32 %v1431, %v1442
        %v1503 = vmul.f32 %v1432, %v1442
        %v1504 = vmul.f32 %v1433, %v1442
        %v1505 = vmul.f32 %v1434, %v1442
        %v1506 = vmul.f32 %v1435, %v1442
        %v1507 = vmul.f32 %v1436, %v1442
        %v1508 = vld [vmem:[%s298] sm:$0x1]
        %v1510 = vlaneseq
        %v1511 = vshrl.u32 %v1510, 7
        %v1512 = vsub.s32 0, %v1511
        %v1513 = vrot.slane %v1508, %v1512
        %v1515 = vadd.f32 %v1444, %v1513
        %v1516 = vadd.f32 %v1445, %v1513
        %v1517 = vadd.f32 %v1446, %v1513
        %v1518 = vadd.f32 %v1447, %v1513
        %v1519 = vadd.f32 %v1448, %v1513
        %v1520 = vadd.f32 %v1449, %v1513
        %v1521 = vadd.f32 %v1450, %v1513
        %v1522 = vadd.f32 %v1451, %v1513
        %v1523 = vadd.f32 %v1452, %v1513
        %v1524 = vadd.f32 %v1453, %v1513
        %v1525 = vadd.f32 %v1454, %v1513
        %v1526 = vadd.f32 %v1455, %v1513
        %v1527 = vadd.f32 %v1456, %v1513
        %v1528 = vadd.f32 %v1457, %v1513
        %v1529 = vadd.f32 %v1458, %v1513
        %v1530 = vadd.f32 %v1459, %v1513
        %v1531 = vadd.f32 %v1460, %v1513
        %v1532 = vadd.f32 %v1461, %v1513
        %v1533 = vadd.f32 %v1462, %v1513
        %v1534 = vadd.f32 %v1463, %v1513
        %v1535 = vadd.f32 %v1464, %v1513
        %v1536 = vadd.f32 %v1465, %v1513
        %v1537 = vadd.f32 %v1466, %v1513
        %v1538 = vadd.f32 %v1467, %v1513
        %v1539 = vadd.f32 %v1468, %v1513
        %v1540 = vadd.f32 %v1469, %v1513
        %v1541 = vadd.f32 %v1470, %v1513
        %v1542 = vadd.f32 %v1471, %v1513
        %v1543 = vadd.f32 %v1472, %v1513
        %v1544 = vadd.f32 %v1473, %v1513
        %v1545 = vadd.f32 %v1474, %v1513
        %v1546 = vadd.f32 %v1475, %v1513
        %v1547 = vadd.f32 %v1476, %v1513
        %v1548 = vadd.f32 %v1477, %v1513
        %v1549 = vadd.f32 %v1478, %v1513
        %v1550 = vadd.f32 %v1479, %v1513
        %v1551 = vadd.f32 %v1480, %v1513
        %v1552 = vadd.f32 %v1481, %v1513
        %v1553 = vadd.f32 %v1482, %v1513
        %v1554 = vadd.f32 %v1483, %v1513
        %v1555 = vadd.f32 %v1484, %v1513
        %v1556 = vadd.f32 %v1485, %v1513
        %v1557 = vadd.f32 %v1486, %v1513
        %v1558 = vadd.f32 %v1487, %v1513
        %v1559 = vadd.f32 %v1488, %v1513
        %v1560 = vadd.f32 %v1489, %v1513
        %v1561 = vadd.f32 %v1490, %v1513
        %v1562 = vadd.f32 %v1491, %v1513
        %v1563 = vadd.f32 %v1492, %v1513
        %v1564 = vadd.f32 %v1493, %v1513
        %v1565 = vadd.f32 %v1494, %v1513
        %v1566 = vadd.f32 %v1495, %v1513
        %v1567 = vadd.f32 %v1496, %v1513
        %v1568 = vadd.f32 %v1497, %v1513
        %v1569 = vadd.f32 %v1498, %v1513
        %v1570 = vadd.f32 %v1499, %v1513
        %v1571 = vadd.f32 %v1500, %v1513
        %v1572 = vadd.f32 %v1501, %v1513
        %v1573 = vadd.f32 %v1502, %v1513
        %v1574 = vadd.f32 %v1503, %v1513
        %v1575 = vadd.f32 %v1504, %v1513
        %v1576 = vadd.f32 %v1505, %v1513
        %v1577 = vadd.f32 %v1506, %v1513
        %v1578 = vadd.f32 %v1507, %v1513
        %v1579 = vmax.f32 %v1515, 0.0
        %v1580 = vmax.f32 %v1516, 0.0
        %v1581 = vmax.f32 %v1517, 0.0
        %v1582 = vmax.f32 %v1518, 0.0
        %v1583 = vmax.f32 %v1519, 0.0
        %v1584 = vmax.f32 %v1520, 0.0
        %v1585 = vmax.f32 %v1521, 0.0
        %v1586 = vmax.f32 %v1522, 0.0
        %v1587 = vmax.f32 %v1523, 0.0
        %v1588 = vmax.f32 %v1524, 0.0
        %v1589 = vmax.f32 %v1525, 0.0
        %v1590 = vmax.f32 %v1526, 0.0
        %v1591 = vmax.f32 %v1527, 0.0
        %v1592 = vmax.f32 %v1528, 0.0
        %v1593 = vmax.f32 %v1529, 0.0
        %v1594 = vmax.f32 %v1530, 0.0
        %v1595 = vmax.f32 %v1531, 0.0
        %v1596 = vmax.f32 %v1532, 0.0
        %v1597 = vmax.f32 %v1533, 0.0
        %v1598 = vmax.f32 %v1534, 0.0
        %v1599 = vmax.f32 %v1535, 0.0
        %v1600 = vmax.f32 %v1536, 0.0
        %v1601 = vmax.f32 %v1537, 0.0
        %v1602 = vmax.f32 %v1538, 0.0
        %v1603 = vmax.f32 %v1539, 0.0
        %v1604 = vmax.f32 %v1540, 0.0
        %v1605 = vmax.f32 %v1541, 0.0
        %v1606 = vmax.f32 %v1542, 0.0
        %v1607 = vmax.f32 %v1543, 0.0
        %v1608 = vmax.f32 %v1544, 0.0
        %v1609 = vmax.f32 %v1545, 0.0
        %v1610 = vmax.f32 %v1546, 0.0
        %v1611 = vmax.f32 %v1547, 0.0
        %v1612 = vmax.f32 %v1548, 0.0
        %v1613 = vmax.f32 %v1549, 0.0
        %v1614 = vmax.f32 %v1550, 0.0
        %v1615 = vmax.f32 %v1551, 0.0
        %v1616 = vmax.f32 %v1552, 0.0
        %v1617 = vmax.f32 %v1553, 0.0
        %v1618 = vmax.f32 %v1554, 0.0
        %v1619 = vmax.f32 %v1555, 0.0
        %v1620 = vmax.f32 %v1556, 0.0
        %v1621 = vmax.f32 %v1557, 0.0
        %v1622 = vmax.f32 %v1558, 0.0
        %v1623 = vmax.f32 %v1559, 0.0
        %v1624 = vmax.f32 %v1560, 0.0
        %v1625 = vmax.f32 %v1561, 0.0
        %v1626 = vmax.f32 %v1562, 0.0
        %v1627 = vmax.f32 %v1563, 0.0
        %v1628 = vmax.f32 %v1564, 0.0
        %v1629 = vmax.f32 %v1565, 0.0
        %v1630 = vmax.f32 %v1566, 0.0
        %v1631 = vmax.f32 %v1567, 0.0
        %v1632 = vmax.f32 %v1568, 0.0
        %v1633 = vmax.f32 %v1569, 0.0
        %v1634 = vmax.f32 %v1570, 0.0
        %v1635 = vmax.f32 %v1571, 0.0
        %v1636 = vmax.f32 %v1572, 0.0
        %v1637 = vmax.f32 %v1573, 0.0
        %v1638 = vmax.f32 %v1574, 0.0
        %v1639 = vmax.f32 %v1575, 0.0
        %v1640 = vmax.f32 %v1576, 0.0
        %v1641 = vmax.f32 %v1577, 0.0
        %v1642 = vmax.f32 %v1578, 0.0
        %v1643 = vpack.c.bf16 %v1580, %v1579
        %v1644 = vpack.c.bf16 %v1582, %v1581
        %v1645 = vpack.c.bf16 %v1584, %v1583
        %v1646 = vpack.c.bf16 %v1586, %v1585
        %v1647 = vpack.c.bf16 %v1588, %v1587
        %v1648 = vpack.c.bf16 %v1590, %v1589
        %v1649 = vpack.c.bf16 %v1592, %v1591
        %v1650 = vpack.c.bf16 %v1594, %v1593
        %v1651 = vpack.c.bf16 %v1596, %v1595
        %v1652 = vpack.c.bf16 %v1598, %v1597
        %v1653 = vpack.c.bf16 %v1600, %v1599
        %v1654 = vpack.c.bf16 %v1602, %v1601
        %v1655 = vpack.c.bf16 %v1604, %v1603
        %v1656 = vpack.c.bf16 %v1606, %v1605
        %v1657 = vpack.c.bf16 %v1608, %v1607
        %v1658 = vpack.c.bf16 %v1610, %v1609
        %v1659 = vpack.c.bf16 %v1612, %v1611
        %v1660 = vpack.c.bf16 %v1614, %v1613
        %v1661 = vpack.c.bf16 %v1616, %v1615
        %v1662 = vpack.c.bf16 %v1618, %v1617
        %v1663 = vpack.c.bf16 %v1620, %v1619
        %v1664 = vpack.c.bf16 %v1622, %v1621
        %v1665 = vpack.c.bf16 %v1624, %v1623
        %v1666 = vpack.c.bf16 %v1626, %v1625
        %v1667 = vpack.c.bf16 %v1628, %v1627
        %v1668 = vpack.c.bf16 %v1630, %v1629
        %v1669 = vpack.c.bf16 %v1632, %v1631
        %v1670 = vpack.c.bf16 %v1634, %v1633
        %v1671 = vpack.c.bf16 %v1636, %v1635
        %v1672 = vpack.c.bf16 %v1638, %v1637
        %v1673 = vpack.c.bf16 %v1640, %v1639
        %v1674 = vpack.c.bf16 %v1642, %v1641
        %v1707 = vunpack.c.l.b16 %v1643
        %v1708 = vunpack.c.h.b16 %v1643
        %v1709 = vunpack.c.l.b16 %v1644
        %v1710 = vunpack.c.h.b16 %v1644
        %v1711 = vunpack.c.l.b16 %v1645
        %v1712 = vunpack.c.h.b16 %v1645
        %v1713 = vunpack.c.l.b16 %v1646
        %v1714 = vunpack.c.h.b16 %v1646
        %v1715 = vunpack.c.l.b16 %v1647
        %v1716 = vunpack.c.h.b16 %v1647
        %v1717 = vunpack.c.l.b16 %v1648
        %v1718 = vunpack.c.h.b16 %v1648
        %v1719 = vunpack.c.l.b16 %v1649
        %v1720 = vunpack.c.h.b16 %v1649
        %v1721 = vunpack.c.l.b16 %v1650
        %v1722 = vunpack.c.h.b16 %v1650
        %v1723 = vunpack.c.l.b16 %v1651
        %v1724 = vunpack.c.h.b16 %v1651
        %v1725 = vunpack.c.l.b16 %v1652
        %v1726 = vunpack.c.h.b16 %v1652
        %v1727 = vunpack.c.l.b16 %v1653
        %v1728 = vunpack.c.h.b16 %v1653
        %v1729 = vunpack.c.l.b16 %v1654
        %v1730 = vunpack.c.h.b16 %v1654
        %v1731 = vunpack.c.l.b16 %v1655
        %v1732 = vunpack.c.h.b16 %v1655
        %v1733 = vunpack.c.l.b16 %v1656
        %v1734 = vunpack.c.h.b16 %v1656
        %v1735 = vunpack.c.l.b16 %v1657
        %v1736 = vunpack.c.h.b16 %v1657
        %v1737 = vunpack.c.l.b16 %v1658
        %v1738 = vunpack.c.h.b16 %v1658
        %v1739 = vunpack.c.l.b16 %v1659
        %v1740 = vunpack.c.h.b16 %v1659
        %v1741 = vunpack.c.l.b16 %v1660
        %v1742 = vunpack.c.h.b16 %v1660
        %v1743 = vunpack.c.l.b16 %v1661
        %v1744 = vunpack.c.h.b16 %v1661
        %v1745 = vunpack.c.l.b16 %v1662
        %v1746 = vunpack.c.h.b16 %v1662
        %v1747 = vunpack.c.l.b16 %v1663
        %v1748 = vunpack.c.h.b16 %v1663
        %v1749 = vunpack.c.l.b16 %v1664
        %v1750 = vunpack.c.h.b16 %v1664
        %v1751 = vunpack.c.l.b16 %v1665
        %v1752 = vunpack.c.h.b16 %v1665
        %v1753 = vunpack.c.l.b16 %v1666
        %v1754 = vunpack.c.h.b16 %v1666
        %v1755 = vunpack.c.l.b16 %v1667
        %v1756 = vunpack.c.h.b16 %v1667
        %v1757 = vunpack.c.l.b16 %v1668
        %v1758 = vunpack.c.h.b16 %v1668
        %v1759 = vunpack.c.l.b16 %v1669
        %v1760 = vunpack.c.h.b16 %v1669
        %v1761 = vunpack.c.l.b16 %v1670
        %v1762 = vunpack.c.h.b16 %v1670
        %v1763 = vunpack.c.l.b16 %v1671
        %v1764 = vunpack.c.h.b16 %v1671
        %v1765 = vunpack.c.l.b16 %v1672
        %v1766 = vunpack.c.h.b16 %v1672
        %v1767 = vunpack.c.l.b16 %v1673
        %v1768 = vunpack.c.h.b16 %v1673
        %v1769 = vunpack.c.l.b16 %v1674
        %v1770 = vunpack.c.h.b16 %v1674
        %v1771 = vpack.c.b16 %v1707, %v1707
        %v1772 = vpack.c.b16 %v1708, %v1708
        %v1773 = vpack.c.b16 %v1709, %v1709
        %v1774 = vpack.c.b16 %v1710, %v1710
        %v1775 = vpack.c.b16 %v1711, %v1711
        %v1776 = vpack.c.b16 %v1712, %v1712
        %v1777 = vpack.c.b16 %v1713, %v1713
        %v1778 = vpack.c.b16 %v1714, %v1714
        %v1779 = vpack.c.b16 %v1715, %v1715
        %v1780 = vpack.c.b16 %v1716, %v1716
        %v1781 = vpack.c.b16 %v1717, %v1717
        %v1782 = vpack.c.b16 %v1718, %v1718
        %v1783 = vpack.c.b16 %v1719, %v1719
        %v1784 = vpack.c.b16 %v1720, %v1720
        %v1785 = vpack.c.b16 %v1721, %v1721
        %v1786 = vpack.c.b16 %v1722, %v1722
        %v1787 = vpack.c.b16 %v1723, %v1723
        %v1788 = vpack.c.b16 %v1724, %v1724
        %v1789 = vpack.c.b16 %v1725, %v1725
        %v1790 = vpack.c.b16 %v1726, %v1726
        %v1791 = vpack.c.b16 %v1727, %v1727
        %v1792 = vpack.c.b16 %v1728, %v1728
        %v1793 = vpack.c.b16 %v1729, %v1729
        %v1794 = vpack.c.b16 %v1730, %v1730
        %v1795 = vpack.c.b16 %v1731, %v1731
        %v1796 = vpack.c.b16 %v1732, %v1732
        %v1797 = vpack.c.b16 %v1733, %v1733
        %v1798 = vpack.c.b16 %v1734, %v1734
        %v1799 = vpack.c.b16 %v1735, %v1735
        %v1800 = vpack.c.b16 %v1736, %v1736
        %v1801 = vpack.c.b16 %v1737, %v1737
        %v1802 = vpack.c.b16 %v1738, %v1738
        %v1803 = vpack.c.b16 %v1739, %v1739
        %v1804 = vpack.c.b16 %v1740, %v1740
        %v1805 = vpack.c.b16 %v1741, %v1741
        %v1806 = vpack.c.b16 %v1742, %v1742
        %v1807 = vpack.c.b16 %v1743, %v1743
        %v1808 = vpack.c.b16 %v1744, %v1744
        %v1809 = vpack.c.b16 %v1745, %v1745
        %v1810 = vpack.c.b16 %v1746, %v1746
        %v1811 = vpack.c.b16 %v1747, %v1747
        %v1812 = vpack.c.b16 %v1748, %v1748
        %v1813 = vpack.c.b16 %v1749, %v1749
        %v1814 = vpack.c.b16 %v1750, %v1750
        %v1815 = vpack.c.b16 %v1751, %v1751
        %v1816 = vpack.c.b16 %v1752, %v1752
        %v1817 = vpack.c.b16 %v1753, %v1753
        %v1818 = vpack.c.b16 %v1754, %v1754
        %v1819 = vpack.c.b16 %v1755, %v1755
        %v1820 = vpack.c.b16 %v1756, %v1756
        %v1821 = vpack.c.b16 %v1757, %v1757
        %v1822 = vpack.c.b16 %v1758, %v1758
        %v1823 = vpack.c.b16 %v1759, %v1759
        %v1824 = vpack.c.b16 %v1760, %v1760
        %v1825 = vpack.c.b16 %v1761, %v1761
        %v1826 = vpack.c.b16 %v1762, %v1762
        %v1827 = vpack.c.b16 %v1763, %v1763
        %v1828 = vpack.c.b16 %v1764, %v1764
        %v1829 = vpack.c.b16 %v1765, %v1765
        %v1830 = vpack.c.b16 %v1766, %v1766
        %v1831 = vpack.c.b16 %v1767, %v1767
        %v1832 = vpack.c.b16 %v1768, %v1768
        %v1833 = vpack.c.b16 %v1769, %v1769
        %v1834 = vpack.c.b16 %v1770, %v1770
        %1899 = vst [vmem:[%s306] sm:$0xf] %v1771
        %1900 = vst [vmem:[%s306 + $0x4] sm:$0xf] %v1772
        %1901 = vst [vmem:[%s306 + $0x8] sm:$0xf] %v1773
        %1902 = vst [vmem:[%s306 + $0xc] sm:$0xf] %v1774
        %1903 = vst [vmem:[%s306 + $0x10] sm:$0xf] %v1775
        %1904 = vst [vmem:[%s306 + $0x14] sm:$0xf] %v1776
        %1905 = vst [vmem:[%s306 + $0x18] sm:$0xf] %v1777
        %1906 = vst [vmem:[%s306 + $0x1c] sm:$0xf] %v1778
        %1907 = vst [vmem:[%s306 + $0x20] sm:$0xf] %v1779
        %1908 = vst [vmem:[%s306 + $0x24] sm:$0xf] %v1780
        %1909 = vst [vmem:[%s306 + $0x28] sm:$0xf] %v1781
        %1910 = vst [vmem:[%s306 + $0x2c] sm:$0xf] %v1782
        %1911 = vst [vmem:[%s306 + $0x30] sm:$0xf] %v1783
        %1912 = vst [vmem:[%s306 + $0x34] sm:$0xf] %v1784
        %1913 = vst [vmem:[%s306 + $0x38] sm:$0xf] %v1785
        %1914 = vst [vmem:[%s306 + $0x3c] sm:$0xf] %v1786
        %1915 = vst [vmem:[%s306 + $0x40] sm:$0xf] %v1787
        %1916 = vst [vmem:[%s306 + $0x44] sm:$0xf] %v1788
        %1917 = vst [vmem:[%s306 + $0x48] sm:$0xf] %v1789
        %1918 = vst [vmem:[%s306 + $0x4c] sm:$0xf] %v1790
        %1919 = vst [vmem:[%s306 + $0x50] sm:$0xf] %v1791
        %1920 = vst [vmem:[%s306 + $0x54] sm:$0xf] %v1792
        %1921 = vst [vmem:[%s306 + $0x58] sm:$0xf] %v1793
        %1922 = vst [vmem:[%s306 + $0x5c] sm:$0xf] %v1794
        %1923 = vst [vmem:[%s306 + $0x60] sm:$0xf] %v1795
        %1924 = vst [vmem:[%s306 + $0x64] sm:$0xf] %v1796
        %1925 = vst [vmem:[%s306 + $0x68] sm:$0xf] %v1797
        %1926 = vst [vmem:[%s306 + $0x6c] sm:$0xf] %v1798
        %1927 = vst [vmem:[%s306 + $0x70] sm:$0xf] %v1799
        %1928 = vst [vmem:[%s306 + $0x74] sm:$0xf] %v1800
        %1929 = vst [vmem:[%s306 + $0x78] sm:$0xf] %v1801
        %1930 = vst [vmem:[%s306 + $0x7c] sm:$0xf] %v1802
        %1931 = vst [vmem:[%s306 + $0x80] sm:$0xf] %v1803
        %1932 = vst [vmem:[%s306 + $0x84] sm:$0xf] %v1804
        %1933 = vst [vmem:[%s306 + $0x88] sm:$0xf] %v1805
        %1934 = vst [vmem:[%s306 + $0x8c] sm:$0xf] %v1806
        %1935 = vst [vmem:[%s306 + $0x90] sm:$0xf] %v1807
        %1936 = vst [vmem:[%s306 + $0x94] sm:$0xf] %v1808
        %1937 = vst [vmem:[%s306 + $0x98] sm:$0xf] %v1809
        %1938 = vst [vmem:[%s306 + $0x9c] sm:$0xf] %v1810
        %1939 = vst [vmem:[%s306 + $0xa0] sm:$0xf] %v1811
        %1940 = vst [vmem:[%s306 + $0xa4] sm:$0xf] %v1812
        %1941 = vst [vmem:[%s306 + $0xa8] sm:$0xf] %v1813
        %1942 = vst [vmem:[%s306 + $0xac] sm:$0xf] %v1814
        %1943 = vst [vmem:[%s306 + $0xb0] sm:$0xf] %v1815
        %1944 = vst [vmem:[%s306 + $0xb4] sm:$0xf] %v1816
        %1945 = vst [vmem:[%s306 + $0xb8] sm:$0xf] %v1817
        %1946 = vst [vmem:[%s306 + $0xbc] sm:$0xf] %v1818
        %1947 = vst [vmem:[%s306 + $0xc0] sm:$0xf] %v1819
        %1948 = vst [vmem:[%s306 + $0xc4] sm:$0xf] %v1820
        %1949 = vst [vmem:[%s306 + $0xc8] sm:$0xf] %v1821
        %1950 = vst [vmem:[%s306 + $0xcc] sm:$0xf] %v1822
        %1951 = vst [vmem:[%s306 + $0xd0] sm:$0xf] %v1823
        %1952 = vst [vmem:[%s306 + $0xd4] sm:$0xf] %v1824
        %1953 = vst [vmem:[%s306 + $0xd8] sm:$0xf] %v1825
        %1954 = vst [vmem:[%s306 + $0xdc] sm:$0xf] %v1826
        %1955 = vst [vmem:[%s306 + $0xe0] sm:$0xf] %v1827
        %1956 = vst [vmem:[%s306 + $0xe4] sm:$0xf] %v1828
        %1957 = vst [vmem:[%s306 + $0xe8] sm:$0xf] %v1829
        %1958 = vst [vmem:[%s306 + $0xec] sm:$0xf] %v1830
        %1959 = vst [vmem:[%s306 + $0xf0] sm:$0xf] %v1831
        %1960 = vst [vmem:[%s306 + $0xf4] sm:$0xf] %v1832
        %1961 = vst [vmem:[%s306 + $0xf8] sm:$0xf] %v1833
        %1962 = vst [vmem:[%s306 + $0xfc] sm:$0xf] %v1834
      $region44: #{matmul_bn_act.1} parent=35 // pred_fallthru
        _
      %s1963 = smul.u32 64, %s20
      %p1964 = scmp.lt.s32.totalorder %s1963, 255
      %s1965 = scalar_select %p1964, %s1963, 255
      %p1966 = scmp.lt.s32.totalorder %s21, 0
      %s1967 = scalar_select %p1966, %s21, 0
      %s1968 = sadd.s32 %s1967, %s1965
      %s1969 = smul.addr %s1968, 4
      %s1970 = scalar_lea.vmem %s4, %s1969
      // Predicated region
      $region45: #{matmul_bn_act.1} parent=35 // pred_check
        %p1971 = pneg %p162
      $region46: #{matmul_bn_act.1} parent=35 // pred_check_branch
        %1973 = sbr.rel (%p1971) target = $region48
      $region47: #{matmul_bn_act.1} parent=35 // pred_region
        %s1974 = smul.u32 64, %s20
      $region48: #{matmul_bn_act.1} parent=35 // pred_fallthru
        _
    $region36: #{matmul_bn_act.1} parent=5 // pred_fallthru
      _
    %p1975 = scmp.le.s32.totalorder 2, %s10
    // Predicated region
    $region49: #{matmul_bn_act.1} parent=5 // pred_check
      %p1976 = pneg %p1975
    $region50: #{matmul_bn_act.1} parent=5 // pred_check_branch
      %1978 = sbr.rel (%p1976) target = $region52
    $region51: #{matmul_bn_act.1} parent=5 // pred_region
      %s1979 = ssub.s32 %s10, 2
      // Predicated region
      $region53: #{matmul_bn_act.1} parent=51 // pred_check
        %p1980 = pneg %p168
      $region54: #{matmul_bn_act.1} parent=51 // pred_check_branch
        %1982 = sbr.rel (%p1980) target = $region56
      $region55: #{matmul_bn_act.1} parent=51 // pred_region
        %s1983 = smul.u32 64, %s23
        %p1984 = scmp.lt.s32.totalorder %s1983, 255
        %s1985 = scalar_select %p1984, %s1983, 255
        %p1986 = scmp.lt.s32.totalorder %s24, 0
        %s1987 = scalar_select %p1986, %s24, 0
        %s1988 = sadd.s32 %s1987, %s1985
        %s1989 = smul.addr %s1988, 4
        %s1990 = scalar_lea.vmem %s4, %s1989
      $region56: #{matmul_bn_act.1} parent=51 // pred_fallthru
        _
    $region52: #{matmul_bn_act.1} parent=5 // pred_fallthru
      _
  $region6: #{matmul_bn_act.1} parent=0 // loop_footer
    %s14 = sadd.s32 1, %s10
  $region7: #{matmul_bn_act.1} parent=0 // loop_footer_branch
    %9 = sbr.rel target = $region3
  $region8: #{matmul_bn_act.1} parent=0 // loop_exit
    _

</llo_original>
